<compile_context>
chip_gen: v6e
topology: v6e:2x2x1
jax: 0.10.0
libtpu: 0.0.40
codegen_flags: <defaults>
</compile_context>

<pallas_src>
import numpy as np
import jax
import jax.numpy as jnp
from jax.experimental import pallas as pl
from jax.experimental.pallas import tpu as pltpu

# Hyperparameters mirroring the PyTorch script
X0 = -1.0
X1 = 1.0
L = X1 - X0
HIDDEN_DIM = 50
LAYERS = 5
M = 5
OUTPUT_DIM = 1
INPUT_DIM = 2 * M + 2          # [T, 1, cos(x*w_1..m), sin(x*w_1..m)]
N_Z = LAYERS - 1               # number of gated Z layers (4)
HP = 64                        # hidden dim padded to 64 sublanes (mult. of 16 for bf16)
HPAD = HP - HIDDEN_DIM

# Fourier frequencies (used only in the wrapper / reference, never captured
# inside the Pallas kernel).
_OMEGAS = (np.arange(1, M + 1, dtype=np.float32) * 2.0 * np.pi / L).reshape(1, M)


def _make_kernel(w_dtype, act_dtype):
    """Fused forward kernel.

    w_dtype:   dtype of the Z-layer weights (bf16 for MXU perf, else f32).
    act_dtype: dtype of tanh / gating math (bf16 on v6e/v7x perf mode, else f32).
    Matmul accumulation is always f32.
    """

    def kernel(x_ref, omega_ref, phase_ref, wt_ref, beff_ref, wfeat_ref,
               wz_ref, bz_ref, wf_ref, bf_ref, out_ref):
        # x_ref is (2, B): row 0 = T, row 1 = spatial x (lane-dense rows).
        t = x_ref[0:1, :]                                   # (1, B)
        xs = x_ref[1:2, :]                                  # (1, B)

        # On-chip Fourier features: single transcendental pass.
        # rows 0..M-1: cos(w_k x); rows M..2M-1: cos(w_k x - pi/2) = sin(w_k x)
        ang = omega_ref[...] * xs + phase_ref[...]          # (2M, B)
        feat = jnp.cos(ang)                                 # (2M, B) f32

        # Fused U|V|H input projection, transposed: (3HP, B).
        # Constant-1 feature is folded into beff; T feature is a rank-1 term.
        pre = (wt_ref[...] * t
               + jnp.dot(wfeat_ref[...], feat,
                         preferred_element_type=jnp.float32)
               + beff_ref[...])                             # (3HP, B) f32
        uvh = jnp.tanh(pre.astype(act_dtype))
        u = uvh[0:HP, :]
        v = uvh[HP:2 * HP, :]
        h = uvh[2 * HP:3 * HP, :]
        d = v - u                                           # hoisted gate delta

        # Gated Z layers (static unroll, 4 iterations).
        for i in range(N_Z):
            zpre = (jnp.dot(wz_ref[i], h.astype(w_dtype),
                            preferred_element_type=jnp.float32)
                    + bz_ref[i])                            # (HP, B) f32
            z = jnp.tanh(zpre.astype(act_dtype))
            h = u + z * d

        # Final projection: sublane reduction over the hidden dim -> (1, B).
        prod = (wf_ref[...] * h).astype(jnp.float32)        # (HP, B)
        out = jnp.sum(prod, axis=0, keepdims=True) + bf_ref[...]
        out_ref[...] = out.astype(out_ref.dtype)

    return kernel


def modified_mlp_forward(X, params, *, block_rows=256, mxu_bf16=True,
                         act_bf16=False, even_blocks=False):
    """Forward pass of ModifiedMLP.  X: (n, 2) -> (n, 1).

    mxu_bf16:  bf16 MXU operands (f32 accumulation).  Helps all generations.
    act_bf16:  bf16 tanh/gating.  Use on v6e/v7x; keep False on v5e.
    even_blocks: pad the grid to an even number of blocks (v7x 2-TC balance).
    """
    assert block_rows % 128 == 0 and block_rows >= 128
    wu, bu, wv, bv, wi, bi, wz, bz, wf, bf = params
    f32 = jnp.float32
    w_dtype = jnp.bfloat16 if mxu_bf16 else f32
    act_dtype = jnp.bfloat16 if act_bf16 else f32

    # ---- wrapper-side weight prep (all transposed: hidden on sublanes) ----
    def padT_w(w):   # (INPUT_DIM, H) -> (HP, INPUT_DIM)
        return jnp.pad(w.T.astype(f32), ((0, HPAD), (0, 0)))

    def padT_b(b):   # (1, H) -> (HP, 1)
        return jnp.pad(b.T.astype(f32), ((0, HPAD), (0, 0)))

    w_uvh = jnp.concatenate([padT_w(wu), padT_w(wv), padT_w(wi)], axis=0)  # (3HP, 12)
    b_uvh = jnp.concatenate([padT_b(bu), padT_b(bv), padT_b(bi)], axis=0)  # (3HP, 1)

    wt_col = w_uvh[:, 0:1]                      # T-feature column        (3HP, 1)
    beff_col = b_uvh + w_uvh[:, 1:2]            # bias + const-1 column   (3HP, 1)
    wfeat = w_uvh[:, 2:2 + 2 * M]               # [cos | sin] columns     (3HP, 2M)

    # Z-layer weights: transpose, pad, pre-cast to the MXU operand dtype.
    wz_p = jnp.pad(jnp.transpose(wz.astype(f32), (0, 2, 1)),
                   ((0, 0), (0, HPAD), (0, HPAD))).astype(w_dtype)   # (N_Z, HP, HP)
    bz_p = jnp.pad(jnp.transpose(bz.astype(f32), (0, 2, 1)),
                   ((0, 0), (0, HPAD), (0, 0)))                       # (N_Z, HP, 1)
    wf_col = jnp.pad(wf.astype(f32), ((0, HPAD), (0, 0)))             # (HP, 1)
    bf_p = bf.reshape(1, 1).astype(f32)                               # (1, 1)

    # Fourier omega / phase columns (kernel inputs, NOT captured constants).
    omegas = (jnp.arange(1, M + 1, dtype=f32) * (2.0 * np.pi / L)).reshape(M, 1)
    omega_col = jnp.concatenate([omegas, omegas], axis=0)             # (2M, 1)
    phase_col = jnp.concatenate(
        [jnp.zeros((M, 1), f32), jnp.full((M, 1), -np.pi / 2.0, f32)], axis=0)

    # ---- batch padding; X passed transposed as (2, n_pad) ----
    n = X.shape[0]
    num_blocks = pl.cdiv(n, block_rows)
    if even_blocks and num_blocks % 2:
        num_blocks += 1
    n_pad = num_blocks * block_rows
    xT = jnp.pad(X.astype(f32).T, ((0, 0), (0, n_pad - n)))           # (2, n_pad)

    def full_spec(a):
        nd = a.ndim
        return pl.BlockSpec(a.shape, lambda i, _nd=nd: (0,) * _nd)

    out = pl.pallas_call(
        _make_kernel(w_dtype, act_dtype),
        out_shape=jax.ShapeDtypeStruct((1, n_pad), f32),
        grid_spec=pltpu.PrefetchScalarGridSpec(
            num_scalar_prefetch=0,
            grid=(num_blocks,),
            in_specs=[
                pl.BlockSpec((2, block_rows), lambda i: (0, i)),
                full_spec(omega_col), full_spec(phase_col),
                full_spec(wt_col), full_spec(beff_col), full_spec(wfeat),
                full_spec(wz_p), full_spec(bz_p),
                full_spec(wf_col), full_spec(bf_p),
            ],
            out_specs=pl.BlockSpec((1, block_rows), lambda i: (0, i)),
        ),
        compiler_params=pltpu.CompilerParams(
            dimension_semantics=("parallel",),
            vmem_limit_bytes=32 * 1024 * 1024),
    )(xT, omega_col, phase_col, wt_col, beff_col, wfeat,
      wz_p, bz_p, wf_col, bf_p)

    return out[0, :n][:, None]                  # (n, 1)


# ----------------------------- reference path -----------------------------

def fourier_features(X):
    """X: (N, 2); col 0 = T, col 1 = spatial x.  Returns (N, 2M+2)."""
    t = X[:, 0:1]
    xs = X[:, 1:2]
    omegas = jnp.asarray(_OMEGAS, dtype=X.dtype)
    proj = xs @ omegas                                  # (N, M)
    fx = jnp.concatenate(
        [jnp.ones_like(xs), jnp.cos(proj), jnp.sin(proj)], axis=1)
    return jnp.concatenate([t, fx], axis=1)             # (N, 2M+2)


def reference_forward(X, params):
    wu, bu, wv, bv, wi, bi, wz, bz, wf, bf = params
    hp = jax.lax.Precision.HIGHEST
    feat = fourier_features(X).astype(jnp.float32)
    u = jnp.tanh(jnp.dot(feat, wu, precision=hp) + bu)
    v = jnp.tanh(jnp.dot(feat, wv, precision=hp) + bv)
    h = jnp.tanh(jnp.dot(feat, wi, precision=hp) + bi)
    for i in range(N_Z):
        z = jnp.tanh(jnp.dot(h, wz[i], precision=hp) + bz[i])
        h = (1.0 - z) * u + z * v
    return jnp.dot(h, wf, precision=hp) + bf


def init_params(key):
    """Deterministic init matching PyTorch nn.Linear shapes (U(-1/sqrt(in), +))."""
    def linear(k, fan_in, fan_out):
        k1, k2 = jax.random.split(k)
        bound = 1.0 / np.sqrt(fan_in)
        w = jax.random.uniform(k1, (fan_in, fan_out), jnp.float32, -bound, bound)
        b = jax.random.uniform(k2, (1, fan_out), jnp.float32, -bound, bound)
        return w, b

    keys = jax.random.split(key, 4 + N_Z)
    wu, bu = linear(keys[0], INPUT_DIM, HIDDEN_DIM)
    wv, bv = linear(keys[1], INPUT_DIM, HIDDEN_DIM)
    wi, bi = linear(keys[2], INPUT_DIM, HIDDEN_DIM)
    wf, bf = linear(keys[3], HIDDEN_DIM, OUTPUT_DIM)
    wz_l, bz_l = [], []
    for i in range(N_Z):
        w, b = linear(keys[4 + i], HIDDEN_DIM, HIDDEN_DIM)
        wz_l.append(w)
        bz_l.append(b)
    wz = jnp.stack(wz_l)          # (N_Z, H, H)
    bz = jnp.stack(bz_l)          # (N_Z, 1, H)
    return (wu, bu, wv, bv, wi, bi, wz, bz, wf, bf)


if __name__ == "__main__":
    key = jax.random.PRNGKey(0)
    k_params, k_x = jax.random.split(key)
    params = init_params(k_params)

    N = 300   # small; not a multiple of block_rows -> exercises batch padding
    X = jax.random.uniform(k_x, (N, 2), jnp.float32, minval=-1.0, maxval=1.0)

    ref = reference_forward(X, params)

    # Exact f32 path: tight check against the reference forward.
    out_f32 = jax.block_until_ready(
        modified_mlp_forward(X, params, mxu_bf16=False, act_bf16=False))
    np.testing.assert_allclose(np.asarray(out_f32), np.asarray(ref),
                               rtol=1e-4, atol=1e-4)

    # bf16 MXU operands, f32 tanh/gating (safe perf mode on all gens incl. v5e).
    out_mix = jax.block_until_ready(
        modified_mlp_forward(X, params, mxu_bf16=True, act_bf16=False))
    np.testing.assert_allclose(np.asarray(out_mix), np.asarray(ref),
                               rtol=5e-2, atol=5e-2)

    # Full bf16 perf mode (v6e/v7x): bf16 MXU operands + bf16 tanh/gating.
    # bf16 rounding compounds across 4 gated layers -> looser tolerance.
    out_bf16 = jax.block_until_ready(
        modified_mlp_forward(X, params, mxu_bf16=True, act_bf16=True))
    np.testing.assert_allclose(np.asarray(out_bf16), np.asarray(ref),
                               rtol=1e-1, atol=1e-1)

    print("KERNEL_OK")
</pallas_src>

<mosaic_0001>
module attributes {stable_mosaic.version = 11 : i64} {
  func.func @kernel(%arg0: i32, %arg1: memref<2x256xf32, #tpu.memory_space<vmem>>, %arg2: memref<10x1xf32, #tpu.memory_space<vmem>>, %arg3: memref<10x1xf32, #tpu.memory_space<vmem>>, %arg4: memref<192x1xf32, #tpu.memory_space<vmem>>, %arg5: memref<192x1xf32, #tpu.memory_space<vmem>>, %arg6: memref<192x10xf32, #tpu.memory_space<vmem>>, %arg7: memref<4x64x64xf32, #tpu.memory_space<vmem>>, %arg8: memref<4x64x1xf32, #tpu.memory_space<vmem>>, %arg9: memref<64x1xf32, #tpu.memory_space<vmem>>, %arg10: memref<1x1xf32, #tpu.memory_space<vmem>>, %arg11: memref<1x256xf32, #tpu.memory_space<vmem>>) attributes {dimension_semantics = [#tpu.dimension_semantics<parallel>], iteration_bounds = array<i64: 2>, scalar_prefetch = 0 : i64, scratch_operands = 0 : i64, tpu.core_type = #tpu.core_type<tc>, window_params = [{transform_indices = @transform_0, window_bounds = array<i64: 2, 256>}, {pipeline_mode = #tpu.pipeline_mode<synchronous>, transform_indices = @transform_1, window_bounds = array<i64: 10, 1>}, {pipeline_mode = #tpu.pipeline_mode<synchronous>, transform_indices = @transform_2, window_bounds = array<i64: 10, 1>}, {pipeline_mode = #tpu.pipeline_mode<synchronous>, transform_indices = @transform_3, window_bounds = array<i64: 192, 1>}, {pipeline_mode = #tpu.pipeline_mode<synchronous>, transform_indices = @transform_4, window_bounds = array<i64: 192, 1>}, {pipeline_mode = #tpu.pipeline_mode<synchronous>, transform_indices = @transform_5, window_bounds = array<i64: 192, 10>}, {pipeline_mode = #tpu.pipeline_mode<synchronous>, transform_indices = @transform_6, window_bounds = array<i64: 4, 64, 64>}, {pipeline_mode = #tpu.pipeline_mode<synchronous>, transform_indices = @transform_7, window_bounds = array<i64: 4, 64, 1>}, {pipeline_mode = #tpu.pipeline_mode<synchronous>, transform_indices = @transform_8, window_bounds = array<i64: 64, 1>}, {pipeline_mode = #tpu.pipeline_mode<synchronous>, transform_indices = @transform_9, window_bounds = array<i64: 1, 1>}, {transform_indices = @transform_10, window_bounds = array<i64: 1, 256>}]} {
    %c0 = arith.constant 0 : index
    %c0_0 = arith.constant 0 : index
    %0 = vector.load %arg1[%c0, %c0_0] : memref<2x256xf32, #tpu.memory_space<vmem>>, vector<1x256xf32>
    %c1 = arith.constant 1 : index
    %c0_1 = arith.constant 0 : index
    %1 = vector.load %arg1[%c1, %c0_1] : memref<2x256xf32, #tpu.memory_space<vmem>>, vector<1x256xf32>
    %c0_2 = arith.constant 0 : index
    %c0_3 = arith.constant 0 : index
    %2 = vector.load %arg2[%c0_2, %c0_3] : memref<10x1xf32, #tpu.memory_space<vmem>>, vector<10x1xf32>
    %3 = vector.broadcast %2 : vector<10x1xf32> to vector<10x256xf32>
    %4 = vector.broadcast %1 : vector<1x256xf32> to vector<10x256xf32>
    %5 = arith.mulf %3, %4 : vector<10x256xf32>
    %c0_4 = arith.constant 0 : index
    %c0_5 = arith.constant 0 : index
    %6 = vector.load %arg3[%c0_4, %c0_5] : memref<10x1xf32, #tpu.memory_space<vmem>>, vector<10x1xf32>
    %7 = vector.broadcast %6 : vector<10x1xf32> to vector<10x256xf32>
    %8 = arith.addf %5, %7 : vector<10x256xf32>
    %9 = math.cos %8 : vector<10x256xf32>
    %c0_6 = arith.constant 0 : index
    %c0_7 = arith.constant 0 : index
    %10 = vector.load %arg4[%c0_6, %c0_7] : memref<192x1xf32, #tpu.memory_space<vmem>>, vector<192x1xf32>
    %11 = vector.broadcast %10 : vector<192x1xf32> to vector<192x256xf32>
    %12 = vector.broadcast %0 : vector<1x256xf32> to vector<192x256xf32>
    %13 = arith.mulf %11, %12 : vector<192x256xf32>
    %c0_8 = arith.constant 0 : index
    %c0_9 = arith.constant 0 : index
    %14 = vector.load %arg6[%c0_8, %c0_9] : memref<192x10xf32, #tpu.memory_space<vmem>>, vector<192x10xf32>
    %cst = arith.constant dense<0.000000e+00> : vector<192x256xf32>
    %15 = tpu.matmul %14, %9, %cst {dimension_numbers = #tpu.dot_dimension_numbers<[1], [0], [0], [1], [0, 0, 1, 1], [], []>} : vector<192x10xf32>, vector<10x256xf32>, vector<192x256xf32> -> vector<192x256xf32>
    %16 = arith.addf %13, %15 : vector<192x256xf32>
    %c0_10 = arith.constant 0 : index
    %c0_11 = arith.constant 0 : index
    %17 = vector.load %arg5[%c0_10, %c0_11] : memref<192x1xf32, #tpu.memory_space<vmem>>, vector<192x1xf32>
    %18 = vector.broadcast %17 : vector<192x1xf32> to vector<192x256xf32>
    %19 = arith.addf %16, %18 : vector<192x256xf32>
    %20 = math.tanh %19 : vector<192x256xf32>
    %21 = vector.extract_strided_slice %20 {offsets = [0, 0], sizes = [64, 256], strides = [1, 1]} : vector<192x256xf32> to vector<64x256xf32>
    %22 = vector.extract_strided_slice %20 {offsets = [64, 0], sizes = [64, 256], strides = [1, 1]} : vector<192x256xf32> to vector<64x256xf32>
    %23 = vector.extract_strided_slice %20 {offsets = [128, 0], sizes = [64, 256], strides = [1, 1]} : vector<192x256xf32> to vector<64x256xf32>
    %24 = arith.subf %22, %21 : vector<64x256xf32>
    %c0_12 = arith.constant 0 : index
    %c0_13 = arith.constant 0 : index
    %c0_14 = arith.constant 0 : index
    %25 = vector.load %arg7[%c0_12, %c0_13, %c0_14] : memref<4x64x64xf32, #tpu.memory_space<vmem>>, vector<1x64x64xf32>
    %26 = vector.shape_cast %25 : vector<1x64x64xf32> to vector<64x64xf32>
    %cst_15 = arith.constant dense<0.000000e+00> : vector<64x256xf32>
    %27 = tpu.matmul %26, %23, %cst_15 {dimension_numbers = #tpu.dot_dimension_numbers<[1], [0], [0], [1], [0, 0, 1, 1], [], []>} : vector<64x64xf32>, vector<64x256xf32>, vector<64x256xf32> -> vector<64x256xf32>
    %c0_16 = arith.constant 0 : index
    %c0_17 = arith.constant 0 : index
    %c0_18 = arith.constant 0 : index
    %28 = vector.load %arg8[%c0_16, %c0_17, %c0_18] : memref<4x64x1xf32, #tpu.memory_space<vmem>>, vector<1x64x1xf32>
    %29 = vector.shape_cast %28 : vector<1x64x1xf32> to vector<64x1xf32>
    %30 = vector.broadcast %29 : vector<64x1xf32> to vector<64x256xf32>
    %31 = arith.addf %27, %30 : vector<64x256xf32>
    %32 = math.tanh %31 : vector<64x256xf32>
    %33 = arith.mulf %32, %24 : vector<64x256xf32>
    %34 = arith.addf %21, %33 : vector<64x256xf32>
    %c1_19 = arith.constant 1 : index
    %c0_20 = arith.constant 0 : index
    %c0_21 = arith.constant 0 : index
    %35 = vector.load %arg7[%c1_19, %c0_20, %c0_21] : memref<4x64x64xf32, #tpu.memory_space<vmem>>, vector<1x64x64xf32>
    %36 = vector.shape_cast %35 : vector<1x64x64xf32> to vector<64x64xf32>
    %cst_22 = arith.constant dense<0.000000e+00> : vector<64x256xf32>
    %37 = tpu.matmul %36, %34, %cst_22 {dimension_numbers = #tpu.dot_dimension_numbers<[1], [0], [0], [1], [0, 0, 1, 1], [], []>} : vector<64x64xf32>, vector<64x256xf32>, vector<64x256xf32> -> vector<64x256xf32>
    %c1_23 = arith.constant 1 : index
    %c0_24 = arith.constant 0 : index
    %c0_25 = arith.constant 0 : index
    %38 = vector.load %arg8[%c1_23, %c0_24, %c0_25] : memref<4x64x1xf32, #tpu.memory_space<vmem>>, vector<1x64x1xf32>
    %39 = vector.shape_cast %38 : vector<1x64x1xf32> to vector<64x1xf32>
    %40 = vector.broadcast %39 : vector<64x1xf32> to vector<64x256xf32>
    %41 = arith.addf %37, %40 : vector<64x256xf32>
    %42 = math.tanh %41 : vector<64x256xf32>
    %43 = arith.mulf %42, %24 : vector<64x256xf32>
    %44 = arith.addf %21, %43 : vector<64x256xf32>
    %c2 = arith.constant 2 : index
    %c0_26 = arith.constant 0 : index
    %c0_27 = arith.constant 0 : index
    %45 = vector.load %arg7[%c2, %c0_26, %c0_27] : memref<4x64x64xf32, #tpu.memory_space<vmem>>, vector<1x64x64xf32>
    %46 = vector.shape_cast %45 : vector<1x64x64xf32> to vector<64x64xf32>
    %cst_28 = arith.constant dense<0.000000e+00> : vector<64x256xf32>
    %47 = tpu.matmul %46, %44, %cst_28 {dimension_numbers = #tpu.dot_dimension_numbers<[1], [0], [0], [1], [0, 0, 1, 1], [], []>} : vector<64x64xf32>, vector<64x256xf32>, vector<64x256xf32> -> vector<64x256xf32>
    %c2_29 = arith.constant 2 : index
    %c0_30 = arith.constant 0 : index
    %c0_31 = arith.constant 0 : index
    %48 = vector.load %arg8[%c2_29, %c0_30, %c0_31] : memref<4x64x1xf32, #tpu.memory_space<vmem>>, vector<1x64x1xf32>
    %49 = vector.shape_cast %48 : vector<1x64x1xf32> to vector<64x1xf32>
    %50 = vector.broadcast %49 : vector<64x1xf32> to vector<64x256xf32>
    %51 = arith.addf %47, %50 : vector<64x256xf32>
    %52 = math.tanh %51 : vector<64x256xf32>
    %53 = arith.mulf %52, %24 : vector<64x256xf32>
    %54 = arith.addf %21, %53 : vector<64x256xf32>
    %c3 = arith.constant 3 : index
    %c0_32 = arith.constant 0 : index
    %c0_33 = arith.constant 0 : index
    %55 = vector.load %arg7[%c3, %c0_32, %c0_33] : memref<4x64x64xf32, #tpu.memory_space<vmem>>, vector<1x64x64xf32>
    %56 = vector.shape_cast %55 : vector<1x64x64xf32> to vector<64x64xf32>
    %cst_34 = arith.constant dense<0.000000e+00> : vector<64x256xf32>
    %57 = tpu.matmul %56, %54, %cst_34 {dimension_numbers = #tpu.dot_dimension_numbers<[1], [0], [0], [1], [0, 0, 1, 1], [], []>} : vector<64x64xf32>, vector<64x256xf32>, vector<64x256xf32> -> vector<64x256xf32>
    %c3_35 = arith.constant 3 : index
    %c0_36 = arith.constant 0 : index
    %c0_37 = arith.constant 0 : index
    %58 = vector.load %arg8[%c3_35, %c0_36, %c0_37] : memref<4x64x1xf32, #tpu.memory_space<vmem>>, vector<1x64x1xf32>
    %59 = vector.shape_cast %58 : vector<1x64x1xf32> to vector<64x1xf32>
    %60 = vector.broadcast %59 : vector<64x1xf32> to vector<64x256xf32>
    %61 = arith.addf %57, %60 : vector<64x256xf32>
    %62 = math.tanh %61 : vector<64x256xf32>
    %63 = arith.mulf %62, %24 : vector<64x256xf32>
    %64 = arith.addf %21, %63 : vector<64x256xf32>
    %c0_38 = arith.constant 0 : index
    %c0_39 = arith.constant 0 : index
    %65 = vector.load %arg9[%c0_38, %c0_39] : memref<64x1xf32, #tpu.memory_space<vmem>>, vector<64x1xf32>
    %66 = vector.broadcast %65 : vector<64x1xf32> to vector<64x256xf32>
    %67 = arith.mulf %66, %64 : vector<64x256xf32>
    %cst_40 = arith.constant dense<0.000000e+00> : vector<256xf32>
    %68 = vector.multi_reduction <add>, %67, %cst_40 [0] : vector<64x256xf32> to vector<256xf32>
    %69 = vector.shape_cast %68 : vector<256xf32> to vector<1x256xf32>
    %c0_41 = arith.constant 0 : index
    %c0_42 = arith.constant 0 : index
    %70 = vector.load %arg10[%c0_41, %c0_42] : memref<1x1xf32, #tpu.memory_space<vmem>>, vector<1x1xf32>
    %71 = vector.broadcast %70 : vector<1x1xf32> to vector<1x256xf32>
    %72 = arith.addf %69, %71 : vector<1x256xf32>
    %c0_43 = arith.constant 0 : index
    %c0_44 = arith.constant 0 : index
    %73 = vector.load %arg11[%c0_43, %c0_44] : memref<1x256xf32, #tpu.memory_space<vmem>>, vector<1x256xf32>
    tpu.vector_store %arg11[%c0_43, %c0_44], %72 {strides = array<i32>} : memref<1x256xf32, #tpu.memory_space<vmem>>, vector<1x256xf32>,
    return
  }
  func.func @transform_0(%arg0: i32) -> (i32, i32) {
    %c0_i32 = arith.constant 0 : i32
    %c0_i32_0 = arith.constant 0 : i32
    return %c0_i32, %arg0 : i32, i32
  }
  func.func @transform_1(%arg0: i32) -> (i32, i32) {
    %c0_i32 = arith.constant 0 : i32
    %c0_i32_0 = arith.constant 0 : i32
    %c0_i32_1 = arith.constant 0 : i32
    return %c0_i32, %c0_i32_0 : i32, i32
  }
  func.func @transform_2(%arg0: i32) -> (i32, i32) {
    %c0_i32 = arith.constant 0 : i32
    %c0_i32_0 = arith.constant 0 : i32
    %c0_i32_1 = arith.constant 0 : i32
    return %c0_i32, %c0_i32_0 : i32, i32
  }
  func.func @transform_3(%arg0: i32) -> (i32, i32) {
    %c0_i32 = arith.constant 0 : i32
    %c0_i32_0 = arith.constant 0 : i32
    %c0_i32_1 = arith.constant 0 : i32
    return %c0_i32, %c0_i32_0 : i32, i32
  }
  func.func @transform_4(%arg0: i32) -> (i32, i32) {
    %c0_i32 = arith.constant 0 : i32
    %c0_i32_0 = arith.constant 0 : i32
    %c0_i32_1 = arith.constant 0 : i32
    return %c0_i32, %c0_i32_0 : i32, i32
  }
  func.func @transform_5(%arg0: i32) -> (i32, i32) {
    %c0_i32 = arith.constant 0 : i32
    %c0_i32_0 = arith.constant 0 : i32
    %c0_i32_1 = arith.constant 0 : i32
    return %c0_i32, %c0_i32_0 : i32, i32
  }
  func.func @transform_6(%arg0: i32) -> (i32, i32, i32) {
    %c0_i32 = arith.constant 0 : i32
    %c0_i32_0 = arith.constant 0 : i32
    %c0_i32_1 = arith.constant 0 : i32
    %c0_i32_2 = arith.constant 0 : i32
    return %c0_i32, %c0_i32_0, %c0_i32_1 : i32, i32, i32
  }
  func.func @transform_7(%arg0: i32) -> (i32, i32, i32) {
    %c0_i32 = arith.constant 0 : i32
    %c0_i32_0 = arith.constant 0 : i32
    %c0_i32_1 = arith.constant 0 : i32
    %c0_i32_2 = arith.constant 0 : i32
    return %c0_i32, %c0_i32_0, %c0_i32_1 : i32, i32, i32
  }
  func.func @transform_8(%arg0: i32) -> (i32, i32) {
    %c0_i32 = arith.constant 0 : i32
    %c0_i32_0 = arith.constant 0 : i32
    %c0_i32_1 = arith.constant 0 : i32
    return %c0_i32, %c0_i32_0 : i32, i32
  }
  func.func @transform_9(%arg0: i32) -> (i32, i32) {
    %c0_i32 = arith.constant 0 : i32
    %c0_i32_0 = arith.constant 0 : i32
    %c0_i32_1 = arith.constant 0 : i32
    return %c0_i32, %c0_i32_0 : i32, i32
  }
  func.func @transform_10(%arg0: i32) -> (i32, i32) {
    %c0_i32 = arith.constant 0 : i32
    %c0_i32_0 = arith.constant 0 : i32
    return %c0_i32, %arg0 : i32, i32
  }
}

</mosaic_0001>

<llo_original>
// kernel: tpu_custom_call.1
$region0: #{tpu_custom_call.1}
  #allocation0 [shape = 'u32[]', space=smem, size = 0x4, offset = 0x4, fixed_abs, tag = 'smem constant byte address 0x4 - core index']
  #allocation1 [shape = 'u32[144,128]{1,0:T(1,128)}', space=vmem, size = 0x12000, scoped, tag = 'internal scratch']
  #allocation2 [shape = 'f32[1,1]{1,0:T(1,128)S(1)}', space=vmem, size = 0x200, scoped, tag = 'scoped memory for tpu_custom_call.1']
  %s0 = inlined_call_operand.vmem [shape: f32[2,512], index: 0, kind: input, shape index: {}]
  %s1 = inlined_call_operand.vmem [shape: f32[10,1], index: 1, kind: input, shape index: {}]
  %s2 = inlined_call_operand.vmem [shape: f32[10,1], index: 2, kind: input, shape index: {}]
  %s3 = inlined_call_operand.vmem [shape: f32[192,1], index: 3, kind: input, shape index: {}]
  %s4 = inlined_call_operand.vmem [shape: f32[192,1], index: 4, kind: input, shape index: {}]
  %s5 = inlined_call_operand.vmem [shape: f32[192,10], index: 5, kind: input, shape index: {}]
  %s6 = inlined_call_operand.vmem [shape: f32[4,64,64], index: 6, kind: input, shape index: {}]
  %s7 = inlined_call_operand.vmem [shape: f32[4,64,1], index: 7, kind: input, shape index: {}]
  %s8 = inlined_call_operand.vmem [shape: f32[64,1], index: 8, kind: input, shape index: {}]
  %s9 = inlined_call_operand.<no memory space> [shape: f32[1,1], index: 9, kind: input, shape index: {}]
  %s10 = inlined_call_operand.hbm [shape: f32[1,512], index: 10, kind: output, shape index: {}]
  %s11 = sld [smem:[#allocation0]]
  $region73: #{tpu_custom_call.1} parent=0
    _
  %s13 = ssub.s32 1, %s11
  %s14 = scalar_select 0, %s13, %s11
  %v15 = vstv %s9
  %16 = vst [vmem:[#allocation2] sm:$0x1] %v15
  $region1: #{tpu_custom_call.1} parent=0
    #allocation3 [shape = 'u8[2048]{0}', space=vmem, size = 0x800, scoped, tag = 'output window, operand 0']
    #allocation4 [shape = 's32[2]{0}', space=sflag, size = 0x8, scoped, tag = 'scoped memory for tpu_custom_call.1']
    %17 = vsyncpa [#allocation4], 0
    %s18 = scalar_lea.sflag [#allocation4], 1
    %19 = vsyncpa %s18, 0
    loop: start=0, step=1, limit=4
    $region2: #{tpu_custom_call.1} parent=1 // loop_pre_header
      _
    $region3: #{tpu_custom_call.1} parent=1 // loop_header
      %s21 = sphi 0, %s25
      %p22 = scmp.ge.s32.totalorder %s21, 4
      %s31 = sphi 0, %s33
      %s34 = sphi 0, %s31
      %s35 = sphi 0, %s34
      %s51 = sphi 0, %s35
      %s55 = sphi 0, %s55
      %s57 = sphi 0, %s55
      %s58 = sphi 0, %s57
      %s72 = sphi 0, %s58
      %s76 = sphi 0, %s76
      %s78 = sphi 0, %s76
      %s79 = sphi 0, %s78
      %s93 = sphi 0, %s79
      %s97 = sphi 0, %s97
      %s99 = sphi 0, %s97
      %s100 = sphi 0, %s99
      %s114 = sphi 0, %s100
      %s118 = sphi 0, %s118
      %s120 = sphi 0, %s118
      %s121 = sphi 0, %s120
      %s135 = sphi 0, %s121
      %s139 = sphi 0, %s139
      %s141 = sphi 0, %s139
      %s142 = sphi 0, %s141
      %s156 = sphi 0, %s142
      %s160 = sphi 0, %s160
      %s162 = sphi 0, %s160
      %s163 = sphi 0, %s162
      %s177 = sphi 0, %s163
      %s181 = sphi 0, %s181
      %s183 = sphi 0, %s181
      %s184 = sphi 0, %s183
      %s198 = sphi 0, %s184
      %s202 = sphi 0, %s202
      %s204 = sphi 0, %s202
      %s205 = sphi 0, %s204
      %s219 = sphi 0, %s205
      %s223 = sphi 0, %s223
      %s225 = sphi 0, %s223
      %s226 = sphi 0, %s225
      %s240 = sphi 0, %s226
      %s246 = sphi 0, %s248
      %s249 = sphi 0, %s246
      %s250 = sphi 0, %s249
      %s266 = sphi 0, %s250
    $region4: #{tpu_custom_call.1} parent=1 // loop_header_branch
      %24 = sbr.rel (%p22) target = $region8
    $region5: #{tpu_custom_call.1} parent=1 // loop_body
      %s26 = ssub.s32 %s21, 1
      %s27 = ssub.s32 %s21, 2
      %s28 = sadd.s32 %s21, 1
      %s29 = ssub.s32 %s21, %s28
      %p30 = scmp.eq.s32.totalorder %s29, 0
      %s32 = sadd.s32 %s31, 1
      %s33 = scalar_select %p30, %s31, %s32
      %p36 = pneg %p30
      %p37 = scmp.eq.s32.totalorder %s21, 1
      %p38 = por %p36, %p37
      %p39 = scmp.ne.s32.totalorder %s31, %s34
      %p40 = scmp.eq.s32.totalorder %s21, 0
      %p41 = por %p39, %p40
      %p42 = scmp.ne.s32.totalorder %s31, %s34
      %p43 = scmp.eq.s32.totalorder %s26, 1
      %p44 = por %p42, %p43
      %p45 = scmp.ne.s32.totalorder %s34, %s35
      %p46 = scmp.eq.s32.totalorder %s26, 0
      %p47 = por %p45, %p46
      %p48 = scmp.ne.s32.totalorder %s34, %s35
      %p49 = scmp.eq.s32.totalorder %s27, 1
      %p50 = por %p48, %p49
      %p52 = scmp.ne.s32.totalorder %s35, %s51
      %p53 = scmp.eq.s32.totalorder %s27, 0
      %p54 = por %p52, %p53
      %s56 = sadd.s32 %s55, 1
      %p59 = scmp.eq.s32.totalorder %s21, 1
      %p60 = scmp.ne.s32.totalorder %s55, %s57
      %p61 = scmp.eq.s32.totalorder %s21, 0
      %p62 = por %p60, %p61
      %p63 = scmp.ne.s32.totalorder %s55, %s57
      %p64 = scmp.eq.s32.totalorder %s26, 1
      %p65 = por %p63, %p64
      %p66 = scmp.ne.s32.totalorder %s57, %s58
      %p67 = scmp.eq.s32.totalorder %s26, 0
      %p68 = por %p66, %p67
      %p69 = scmp.ne.s32.totalorder %s57, %s58
      %p70 = scmp.eq.s32.totalorder %s27, 1
      %p71 = por %p69, %p70
      %p73 = scmp.ne.s32.totalorder %s58, %s72
      %p74 = scmp.eq.s32.totalorder %s27, 0
      %p75 = por %p73, %p74
      %s77 = sadd.s32 %s76, 1
      %p80 = scmp.eq.s32.totalorder %s21, 1
      %p81 = scmp.ne.s32.totalorder %s76, %s78
      %p82 = scmp.eq.s32.totalorder %s21, 0
      %p83 = por %p81, %p82
      %p84 = scmp.ne.s32.totalorder %s76, %s78
      %p85 = scmp.eq.s32.totalorder %s26, 1
      %p86 = por %p84, %p85
      %p87 = scmp.ne.s32.totalorder %s78, %s79
      %p88 = scmp.eq.s32.totalorder %s26, 0
      %p89 = por %p87, %p88
      %p90 = scmp.ne.s32.totalorder %s78, %s79
      %p91 = scmp.eq.s32.totalorder %s27, 1
      %p92 = por %p90, %p91
      %p94 = scmp.ne.s32.totalorder %s79, %s93
      %p95 = scmp.eq.s32.totalorder %s27, 0
      %p96 = por %p94, %p95
      %s98 = sadd.s32 %s97, 1
      %p101 = scmp.eq.s32.totalorder %s21, 1
      %p102 = scmp.ne.s32.totalorder %s97, %s99
      %p103 = scmp.eq.s32.totalorder %s21, 0
      %p104 = por %p102, %p103
      %p105 = scmp.ne.s32.totalorder %s97, %s99
      %p106 = scmp.eq.s32.totalorder %s26, 1
      %p107 = por %p105, %p106
      %p108 = scmp.ne.s32.totalorder %s99, %s100
      %p109 = scmp.eq.s32.totalorder %s26, 0
      %p110 = por %p108, %p109
      %p111 = scmp.ne.s32.totalorder %s99, %s100
      %p112 = scmp.eq.s32.totalorder %s27, 1
      %p113 = por %p111, %p112
      %p115 = scmp.ne.s32.totalorder %s100, %s114
      %p116 = scmp.eq.s32.totalorder %s27, 0
      %p117 = por %p115, %p116
      %s119 = sadd.s32 %s118, 1
      %p122 = scmp.eq.s32.totalorder %s21, 1
      %p123 = scmp.ne.s32.totalorder %s118, %s120
      %p124 = scmp.eq.s32.totalorder %s21, 0
      %p125 = por %p123, %p124
      %p126 = scmp.ne.s32.totalorder %s118, %s120
      %p127 = scmp.eq.s32.totalorder %s26, 1
      %p128 = por %p126, %p127
      %p129 = scmp.ne.s32.totalorder %s120, %s121
      %p130 = scmp.eq.s32.totalorder %s26, 0
      %p131 = por %p129, %p130
      %p132 = scmp.ne.s32.totalorder %s120, %s121
      %p133 = scmp.eq.s32.totalorder %s27, 1
      %p134 = por %p132, %p133
      %p136 = scmp.ne.s32.totalorder %s121, %s135
      %p137 = scmp.eq.s32.totalorder %s27, 0
      %p138 = por %p136, %p137
      %s140 = sadd.s32 %s139, 1
      %p143 = scmp.eq.s32.totalorder %s21, 1
      %p144 = scmp.ne.s32.totalorder %s139, %s141
      %p145 = scmp.eq.s32.totalorder %s21, 0
      %p146 = por %p144, %p145
      %p147 = scmp.ne.s32.totalorder %s139, %s141
      %p148 = scmp.eq.s32.totalorder %s26, 1
      %p149 = por %p147, %p148
      %p150 = scmp.ne.s32.totalorder %s141, %s142
      %p151 = scmp.eq.s32.totalorder %s26, 0
      %p152 = por %p150, %p151
      %p153 = scmp.ne.s32.totalorder %s141, %s142
      %p154 = scmp.eq.s32.totalorder %s27, 1
      %p155 = por %p153, %p154
      %p157 = scmp.ne.s32.totalorder %s142, %s156
      %p158 = scmp.eq.s32.totalorder %s27, 0
      %p159 = por %p157, %p158
      %s161 = sadd.s32 %s160, 1
      %p164 = scmp.eq.s32.totalorder %s21, 1
      %p165 = scmp.ne.s32.totalorder %s160, %s162
      %p166 = scmp.eq.s32.totalorder %s21, 0
      %p167 = por %p165, %p166
      %p168 = scmp.ne.s32.totalorder %s160, %s162
      %p169 = scmp.eq.s32.totalorder %s26, 1
      %p170 = por %p168, %p169
      %p171 = scmp.ne.s32.totalorder %s162, %s163
      %p172 = scmp.eq.s32.totalorder %s26, 0
      %p173 = por %p171, %p172
      %p174 = scmp.ne.s32.totalorder %s162, %s163
      %p175 = scmp.eq.s32.totalorder %s27, 1
      %p176 = por %p174, %p175
      %p178 = scmp.ne.s32.totalorder %s163, %s177
      %p179 = scmp.eq.s32.totalorder %s27, 0
      %p180 = por %p178, %p179
      %s182 = sadd.s32 %s181, 1
      %p185 = scmp.eq.s32.totalorder %s21, 1
      %p186 = scmp.ne.s32.totalorder %s181, %s183
      %p187 = scmp.eq.s32.totalorder %s21, 0
      %p188 = por %p186, %p187
      %p189 = scmp.ne.s32.totalorder %s181, %s183
      %p190 = scmp.eq.s32.totalorder %s26, 1
      %p191 = por %p189, %p190
      %p192 = scmp.ne.s32.totalorder %s183, %s184
      %p193 = scmp.eq.s32.totalorder %s26, 0
      %p194 = por %p192, %p193
      %p195 = scmp.ne.s32.totalorder %s183, %s184
      %p196 = scmp.eq.s32.totalorder %s27, 1
      %p197 = por %p195, %p196
      %p199 = scmp.ne.s32.totalorder %s184, %s198
      %p200 = scmp.eq.s32.totalorder %s27, 0
      %p201 = por %p199, %p200
      %s203 = sadd.s32 %s202, 1
      %p206 = scmp.eq.s32.totalorder %s21, 1
      %p207 = scmp.ne.s32.totalorder %s202, %s204
      %p208 = scmp.eq.s32.totalorder %s21, 0
      %p209 = por %p207, %p208
      %p210 = scmp.ne.s32.totalorder %s202, %s204
      %p211 = scmp.eq.s32.totalorder %s26, 1
      %p212 = por %p210, %p211
      %p213 = scmp.ne.s32.totalorder %s204, %s205
      %p214 = scmp.eq.s32.totalorder %s26, 0
      %p215 = por %p213, %p214
      %p216 = scmp.ne.s32.totalorder %s204, %s205
      %p217 = scmp.eq.s32.totalorder %s27, 1
      %p218 = por %p216, %p217
      %p220 = scmp.ne.s32.totalorder %s205, %s219
      %p221 = scmp.eq.s32.totalorder %s27, 0
      %p222 = por %p220, %p221
      %s224 = sadd.s32 %s223, 1
      %p227 = scmp.eq.s32.totalorder %s21, 1
      %p228 = scmp.ne.s32.totalorder %s223, %s225
      %p229 = scmp.eq.s32.totalorder %s21, 0
      %p230 = por %p228, %p229
      %p231 = scmp.ne.s32.totalorder %s223, %s225
      %p232 = scmp.eq.s32.totalorder %s26, 1
      %p233 = por %p231, %p232
      %p234 = scmp.ne.s32.totalorder %s225, %s226
      %p235 = scmp.eq.s32.totalorder %s26, 0
      %p236 = por %p234, %p235
      %p237 = scmp.ne.s32.totalorder %s225, %s226
      %p238 = scmp.eq.s32.totalorder %s27, 1
      %p239 = por %p237, %p238
      %p241 = scmp.ne.s32.totalorder %s226, %s240
      %p242 = scmp.eq.s32.totalorder %s27, 0
      %p243 = por %p241, %p242
      %s244 = ssub.s32 %s21, %s28
      %p245 = scmp.eq.s32.totalorder %s244, 0
      %s247 = sadd.s32 %s246, 1
      %s248 = scalar_select %p245, %s246, %s247
      %p251 = pneg %p245
      %p252 = scmp.eq.s32.totalorder %s21, 1
      %p253 = por %p251, %p252
      %p254 = scmp.ne.s32.totalorder %s246, %s249
      %p255 = scmp.eq.s32.totalorder %s21, 0
      %p256 = por %p254, %p255
      %p257 = scmp.ne.s32.totalorder %s246, %s249
      %p258 = scmp.eq.s32.totalorder %s26, 1
      %p259 = por %p257, %p258
      %p260 = scmp.ne.s32.totalorder %s249, %s250
      %p261 = scmp.eq.s32.totalorder %s26, 0
      %p262 = por %p260, %p261
      %p263 = scmp.ne.s32.totalorder %s249, %s250
      %p264 = scmp.eq.s32.totalorder %s27, 1
      %p265 = por %p263, %p264
      %p267 = scmp.ne.s32.totalorder %s250, %s266
      %p268 = scmp.eq.s32.totalorder %s27, 0
      %p269 = por %p267, %p268
      %p270 = scmp.le.s32.totalorder 1, %s21
      %p271 = scmp.lt.s32.totalorder %s21, 3
      %p272 = pnand %p270, %p271
      %p273 = pneg %p272
      // Predicated region
      $region9: #{tpu_custom_call.1} parent=5 // pred_check
        _
      $region10: #{tpu_custom_call.1} parent=5 // pred_check_branch
        %275 = sbr.rel (%p272) target = $region12
      $region11: #{tpu_custom_call.1} parent=5 // pred_region
        %s276 = ssub.s32 %s21, 1
        // Predicated region
        $region13: #{tpu_custom_call.1} parent=11 // pred_check
          %p277 = pneg %p68
        $region14: #{tpu_custom_call.1} parent=11 // pred_check_branch
          %279 = sbr.rel (%p277) target = $region16
        $region15: #{tpu_custom_call.1} parent=11 // pred_region
          _
        $region16: #{tpu_custom_call.1} parent=11 // pred_fallthru
          _
        // Predicated region
        $region17: #{tpu_custom_call.1} parent=11 // pred_check
          %p280 = pneg %p89
        $region18: #{tpu_custom_call.1} parent=11 // pred_check_branch
          %282 = sbr.rel (%p280) target = $region20
        $region19: #{tpu_custom_call.1} parent=11 // pred_region
          _
        $region20: #{tpu_custom_call.1} parent=11 // pred_fallthru
          _
        // Predicated region
        $region21: #{tpu_custom_call.1} parent=11 // pred_check
          %p283 = pneg %p110
        $region22: #{tpu_custom_call.1} parent=11 // pred_check_branch
          %285 = sbr.rel (%p283) target = $region24
        $region23: #{tpu_custom_call.1} parent=11 // pred_region
          _
        $region24: #{tpu_custom_call.1} parent=11 // pred_fallthru
          _
        // Predicated region
        $region25: #{tpu_custom_call.1} parent=11 // pred_check
          %p286 = pneg %p131
        $region26: #{tpu_custom_call.1} parent=11 // pred_check_branch
          %288 = sbr.rel (%p286) target = $region28
        $region27: #{tpu_custom_call.1} parent=11 // pred_region
          _
        $region28: #{tpu_custom_call.1} parent=11 // pred_fallthru
          _
        // Predicated region
        $region29: #{tpu_custom_call.1} parent=11 // pred_check
          %p289 = pneg %p152
        $region30: #{tpu_custom_call.1} parent=11 // pred_check_branch
          %291 = sbr.rel (%p289) target = $region32
        $region31: #{tpu_custom_call.1} parent=11 // pred_region
          _
        $region32: #{tpu_custom_call.1} parent=11 // pred_fallthru
          _
        // Predicated region
        $region33: #{tpu_custom_call.1} parent=11 // pred_check
          %p292 = pneg %p173
        $region34: #{tpu_custom_call.1} parent=11 // pred_check_branch
          %294 = sbr.rel (%p292) target = $region36
        $region35: #{tpu_custom_call.1} parent=11 // pred_region
          _
        $region36: #{tpu_custom_call.1} parent=11 // pred_fallthru
          _
        // Predicated region
        $region37: #{tpu_custom_call.1} parent=11 // pred_check
          %p295 = pneg %p194
        $region38: #{tpu_custom_call.1} parent=11 // pred_check_branch
          %297 = sbr.rel (%p295) target = $region40
        $region39: #{tpu_custom_call.1} parent=11 // pred_region
          _
        $region40: #{tpu_custom_call.1} parent=11 // pred_fallthru
          _
        // Predicated region
        $region41: #{tpu_custom_call.1} parent=11 // pred_check
          %p298 = pneg %p215
        $region42: #{tpu_custom_call.1} parent=11 // pred_check_branch
          %300 = sbr.rel (%p298) target = $region44
        $region43: #{tpu_custom_call.1} parent=11 // pred_region
          _
        $region44: #{tpu_custom_call.1} parent=11 // pred_fallthru
          _
        // Predicated region
        $region45: #{tpu_custom_call.1} parent=11 // pred_check
          %p301 = pneg %p236
        $region46: #{tpu_custom_call.1} parent=11 // pred_check_branch
          %303 = sbr.rel (%p301) target = $region48
        $region47: #{tpu_custom_call.1} parent=11 // pred_region
          _
        $region48: #{tpu_custom_call.1} parent=11 // pred_fallthru
          _
      $region12: #{tpu_custom_call.1} parent=5 // pred_fallthru
        _
      %p304 = scmp.lt.s32.totalorder %s21, 2
      // Predicated region
      $region49: #{tpu_custom_call.1} parent=5 // pred_check
        %p305 = pneg %p304
      $region50: #{tpu_custom_call.1} parent=5 // pred_check_branch
        %307 = sbr.rel (%p305) target = $region52
      $region51: #{tpu_custom_call.1} parent=5 // pred_region
        // Predicated region
        $region53: #{tpu_custom_call.1} parent=51 // pred_check
          %p308 = pneg %p41
        $region54: #{tpu_custom_call.1} parent=51 // pred_check_branch
          %310 = sbr.rel (%p308) target = $region56
        $region55: #{tpu_custom_call.1} parent=51 // pred_region
          %s311 = smul.u32 2, %s21
          %p312 = scmp.lt.s32.totalorder %s311, 3
          %s313 = scalar_select %p312, %s311, 3
          %s314 = smul.addr %s313, 2
          %s315 = scalar_lea.vmem %s0, %s314
          %s316 = smul.u32 2, %s21
        $region56: #{tpu_custom_call.1} parent=51 // pred_fallthru
          _
      $region52: #{tpu_custom_call.1} parent=5 // pred_fallthru
        _
      %p317 = scmp.le.s32.totalorder 1, %s21
      %p318 = scmp.lt.s32.totalorder %s21, 3
      %p319 = pnand %p317, %p318
      %p320 = pneg %p319
      // Predicated region
      $region57: #{tpu_custom_call.1} parent=5 // pred_check
        _
      $region58: #{tpu_custom_call.1} parent=5 // pred_check_branch
        %322 = sbr.rel (%p319) target = $region60
      $region59: #{tpu_custom_call.1} parent=5 // pred_region
        %s323 = ssub.s32 %s21, 1
        %s324 = smul.u32 2, %s26
        %p325 = scmp.lt.s32.totalorder %s324, 3
        %s326 = scalar_select %p325, %s324, 3
        %s327 = smul.addr %s326, 2
        %s328 = scalar_lea.vmem %s0, %s327
        %p329 = pneg %p47
        %p330 = pneg %p44
        %p331 = pneg %p68
        %p332 = pneg %p65
        %p333 = pneg %p89
        %p334 = pneg %p86
        %p335 = pneg %p110
        %p336 = pneg %p107
        %p337 = pneg %p131
        %p338 = pneg %p128
        %p339 = pneg %p152
        %p340 = pneg %p149
        %p341 = pneg %p173
        %p342 = pneg %p170
        %p343 = pneg %p194
        %p344 = pneg %p191
        %p345 = pneg %p215
        %p346 = pneg %p212
        %p347 = pneg %p236
        %p348 = pneg %p233
        %p349 = pneg %p262
        %p350 = pneg %p259
        %s351 = sand.u32 %s249, 1
        %s352 = scalar_lea.sflag [#allocation4], %s351
        %s353 = sand.u32 %s249, 1
        %s354 = smul.addr %s353, 2
        %s355 = scalar_lea.vmem [#allocation3], %s354
        %s356 = smul.u32 2, %s26
        %p357 = scmp.lt.s32.totalorder %s356, 3
        %s358 = scalar_select %p357, %s356, 3
        %s359 = smul.addr %s358, 2
        %s360 = scalar_lea.vmem %s0, %s359
        %s361 = smul.u32 2, %s26
        %s362 = smul.u32 2, %s26
        %v363 = vld [vmem:[%s360] ss:$2 sm:$0x3]
        %s364 = scalar_lea.vmem %s360, 1
        %v365 = vld [vmem:[%s364] ss:$2 sm:$0x3]
        %v366 = vld [vmem:[%s1] sm:$0xff]
        %v367 = vld [vmem:[%s1 + $0x8] sm:$0x3]
        %369 = vset.pattern.permute.xlu0 0
        %370 = vperm.xlu0 %369, %v366
        %v371 = vpop.permute.xlu0 %370
        %374 = vset.pattern.permute.xlu0 0
        %375 = vperm.xlu0 %374, %v367
        %v376 = vpop.permute.xlu0 %375
        %v379 = vlaneseq
        %v380 = vshrl.u32 %v379, 7
        %v381 = vsub.s32 0, %v380
        %v382 = vrot.slane %v365, %v381
        %v383 = vlaneseq
        %v384 = vshrl.u32 %v383, 7
        %v385 = vsub.s32 1, %v384
        %v386 = vrot.slane %v365, %v385
        %v389 = vmul.f32 %v371, %v382
        %v390 = vmul.f32 %v371, %v386
        %v391 = vmul.f32 %v376, %v382
        %v392 = vmul.f32 %v376, %v386
        %v393 = vld [vmem:[%s2] sm:$0xff]
        %v394 = vld [vmem:[%s2 + $0x8] sm:$0x3]
        %396 = vset.pattern.permute.xlu0 0
        %397 = vperm.xlu0 %396, %v393
        %v398 = vpop.permute.xlu0 %397
        %401 = vset.pattern.permute.xlu0 0
        %402 = vperm.xlu0 %401, %v394
        %v403 = vpop.permute.xlu0 %402
        %v405 = vadd.f32 %v389, %v398
        %v406 = vadd.f32 %v390, %v398
        %v407 = vadd.f32 %v391, %v403
        %v408 = vadd.f32 %v392, %v403
        %v409 = vand.u32 2147483647, %v405
        %vm410 = vcmp.le.f32.partialorder %v409, 0.7853982
        %vm411 = vcmp.lt.s32.totalorder %v405, 0
        %v412 = vand.u32 %v405, 2139095040
        %v413 = vshrl.u32 %v412, 23
        %v414 = vsub.s32 %v413, 127
        %v415 = vand.u32 2147483647, %v405
        %v416 = vand.u32 %v415, 8388607
        %v417 = vor.u32 %v416, 8388608
        %v418 = vsub.s32 0, %v417
        %v419 = vadd.s32 %v414, 1
        %vm420 = vcmp.gt.s32.totalorder %v419, 0
        %v421 = vsel %vm420, %v419, 0
        %v422 = vshrl.u32 %v421, 5
        %v423 = vand.u32 %v421, 31
        %v424 = vsub.s32 32, %v423
        %v425 = vshrl.u32 683565275, %v424
        %v426 = vshll.u32 683565275, %v423
        %v427 = vshrl.u32 2475754826, %v424
        %v428 = vor.u32 %v426, %v427
        %v429 = vshll.u32 2475754826, %v423
        %v430 = vshrl.u32 2131351028, %v424
        %v431 = vor.u32 %v429, %v430
        %v432 = vshll.u32 2131351028, %v423
        %v433 = vshrl.u32 2102212464, %v424
        %v434 = vor.u32 %v432, %v433
        %v435 = vshll.u32 2102212464, %v423
        %v436 = vshrl.u32 920167782, %v424
        %v437 = vor.u32 %v435, %v436
        %v438 = vshll.u32 920167782, %v423
        %v439 = vshrl.u32 1326507024, %v424
        %v440 = vor.u32 %v438, %v439
        %vm441 = vcmp.lt.s32.totalorder %v422, 1
        %vm442 = vcmp.lt.s32.totalorder %v422, 2
        %vm443 = vcmp.lt.s32.totalorder %v422, 3
        %vm444 = vcmp.lt.s32.totalorder %v422, 4
        %v445 = vsel %vm441, %v425, %v428
        %v446 = vsel %vm444, %v434, 2102212464
        %v447 = vsel %vm443, %v431, %v446
        %v448 = vsel %vm442, %v445, %v447
        %v449 = vsel %vm441, %v428, %v431
        %v450 = vsel %vm444, %v437, 920167782
        %v451 = vsel %vm443, %v434, %v450
        %v452 = vsel %vm442, %v449, %v451
        %v453 = vsel %vm441, %v431, %v434
        %v454 = vsel %vm444, %v440, 1326507024
        %v455 = vsel %vm443, %v437, %v454
        %v456 = vsel %vm442, %v453, %v455
        %v457 = vshll.u32 %v417, 8
        %v458 = vmul.u32.u64.compose %v457, %v456
        %v459 = vextract.low.u32 %v458
        %v460 = vextract.high.u32 %v458
        %v461 = vmul.u32.u64.compose %v457, %v452
        %v462 = vextract.low.u32 %v461
        %v463 = vextract.high.u32 %v461
        %v464 = vmul.u32 %v457, %v448
        %v465 = vadd.s32 %v460, %v462
        %vm466 = vc.u32 %v460, %v462
        %v467 = vadd.s32 %v463, 1
        %v468 = vsel %vm466, %v467, %v463
        %v469 = vadd.s32 %v464, %v468
        %v470 = vadd.s32 %v469, 536870912
        %v471 = vshrl.u32 %v470, 30
        %v472 = vshll.u32 %v471, 30
        %v473 = vsub.s32 %v469, %v472
        %vm474 = vcmp.lt.s32.totalorder %v473, 0
        %v475 = vsub.s32 0, %v473
        %v476 = vsel %vm474, %v475, %v473
        %v477 = vclz %v476
        %v478 = vsub.s32 %v477, 2
        %vm479 = vcmp.gt.s32.totalorder 0, %v478
        %v480 = vsel %vm479, 0, %v478
        %v481 = vsub.s32 32, %v480
        %v482 = vshll.u32 %v473, %v480
        %v483 = vshrl.u32 %v465, %v481
        %v484 = vor.u32 %v482, %v483
        %v485 = vsub.s32 4294967266, %v480
        %v486 = vadd.s32 %v485, 127
        %v487 = vshll.u32 %v486, 23
        %v488 = vor.u32 4788187, %v487
        %v489 = vand.u32 2147483647, %v488
        %v491 = vcvt.s32.f32 %v484
        %v492 = vmul.f32 %v491, %v489
        %v493 = vxor.u32 %v492, 2147483648
        %v494 = vsel %vm411, %v493, %v492
        %v495 = vsub.s32 4, %v471
        %v496 = vsel %vm411, %v495, %v471
        %v497 = vsel %vm410, %v405, %v494
        %v498 = vsel %vm410, 0, %v496
        %v499 = vcosq.f32.pop %v497
        %v500 = vsinq.f32.pop %v497
        %vm501 = vweird.f32 %v405
        %v502 = vand.u32 %v498, 3
        %vm503 = vcmp.lt.s32.totalorder %v502, 2
        %vm504 = vcmp.eq.s32.totalorder %v502, 0
        %v505 = vxor.u32 %v500, 2147483648
        %v506 = vsel %vm504, %v499, %v505
        %vm507 = vcmp.eq.s32.totalorder %v502, 2
        %v508 = vxor.u32 %v499, 2147483648
        %v509 = vsel %vm507, %v508, %v500
        %v510 = vsel %vm503, %v506, %v509
        %v511 = vsel %vm501, nan, %v510
        %v512 = vand.u32 2147483647, %v406
        %vm513 = vcmp.le.f32.partialorder %v512, 0.7853982
        %vm514 = vcmp.lt.s32.totalorder %v406, 0
        %v515 = vand.u32 %v406, 2139095040
        %v516 = vshrl.u32 %v515, 23
        %v517 = vsub.s32 %v516, 127
        %v518 = vand.u32 2147483647, %v406
        %v519 = vand.u32 %v518, 8388607
        %v520 = vor.u32 %v519, 8388608
        %v521 = vsub.s32 0, %v520
        %v522 = vadd.s32 %v517, 1
        %vm523 = vcmp.gt.s32.totalorder %v522, 0
        %v524 = vsel %vm523, %v522, 0
        %v525 = vshrl.u32 %v524, 5
        %v526 = vand.u32 %v524, 31
        %v527 = vsub.s32 32, %v526
        %v528 = vshrl.u32 683565275, %v527
        %v529 = vshll.u32 683565275, %v526
        %v530 = vshrl.u32 2475754826, %v527
        %v531 = vor.u32 %v529, %v530
        %v532 = vshll.u32 2475754826, %v526
        %v533 = vshrl.u32 2131351028, %v527
        %v534 = vor.u32 %v532, %v533
        %v535 = vshll.u32 2131351028, %v526
        %v536 = vshrl.u32 2102212464, %v527
        %v537 = vor.u32 %v535, %v536
        %v538 = vshll.u32 2102212464, %v526
        %v539 = vshrl.u32 920167782, %v527
        %v540 = vor.u32 %v538, %v539
        %v541 = vshll.u32 920167782, %v526
        %v542 = vshrl.u32 1326507024, %v527
        %v543 = vor.u32 %v541, %v542
        %vm544 = vcmp.lt.s32.totalorder %v525, 1
        %vm545 = vcmp.lt.s32.totalorder %v525, 2
        %vm546 = vcmp.lt.s32.totalorder %v525, 3
        %vm547 = vcmp.lt.s32.totalorder %v525, 4
        %v548 = vsel %vm544, %v528, %v531
        %v549 = vsel %vm547, %v537, 2102212464
        %v550 = vsel %vm546, %v534, %v549
        %v551 = vsel %vm545, %v548, %v550
        %v552 = vsel %vm544, %v531, %v534
        %v553 = vsel %vm547, %v540, 920167782
        %v554 = vsel %vm546, %v537, %v553
        %v555 = vsel %vm545, %v552, %v554
        %v556 = vsel %vm544, %v534, %v537
        %v557 = vsel %vm547, %v543, 1326507024
        %v558 = vsel %vm546, %v540, %v557
        %v559 = vsel %vm545, %v556, %v558
        %v560 = vshll.u32 %v520, 8
        %v561 = vmul.u32.u64.compose %v560, %v559
        %v562 = vextract.low.u32 %v561
        %v563 = vextract.high.u32 %v561
        %v564 = vmul.u32.u64.compose %v560, %v555
        %v565 = vextract.low.u32 %v564
        %v566 = vextract.high.u32 %v564
        %v567 = vmul.u32 %v560, %v551
        %v568 = vadd.s32 %v563, %v565
        %vm569 = vc.u32 %v563, %v565
        %v570 = vadd.s32 %v566, 1
        %v571 = vsel %vm569, %v570, %v566
        %v572 = vadd.s32 %v567, %v571
        %v573 = vadd.s32 %v572, 536870912
        %v574 = vshrl.u32 %v573, 30
        %v575 = vshll.u32 %v574, 30
        %v576 = vsub.s32 %v572, %v575
        %vm577 = vcmp.lt.s32.totalorder %v576, 0
        %v578 = vsub.s32 0, %v576
        %v579 = vsel %vm577, %v578, %v576
        %v580 = vclz %v579
        %v581 = vsub.s32 %v580, 2
        %vm582 = vcmp.gt.s32.totalorder 0, %v581
        %v583 = vsel %vm582, 0, %v581
        %v584 = vsub.s32 32, %v583
        %v585 = vshll.u32 %v576, %v583
        %v586 = vshrl.u32 %v568, %v584
        %v587 = vor.u32 %v585, %v586
        %v588 = vsub.s32 4294967266, %v583
        %v589 = vadd.s32 %v588, 127
        %v590 = vshll.u32 %v589, 23
        %v591 = vor.u32 4788187, %v590
        %v592 = vand.u32 2147483647, %v591
        %v594 = vcvt.s32.f32 %v587
        %v595 = vmul.f32 %v594, %v592
        %v596 = vxor.u32 %v595, 2147483648
        %v597 = vsel %vm514, %v596, %v595
        %v598 = vsub.s32 4, %v574
        %v599 = vsel %vm514, %v598, %v574
        %v600 = vsel %vm513, %v406, %v597
        %v601 = vsel %vm513, 0, %v599
        %v602 = vcosq.f32.pop %v600
        %v603 = vsinq.f32.pop %v600
        %vm604 = vweird.f32 %v406
        %v605 = vand.u32 %v601, 3
        %vm606 = vcmp.lt.s32.totalorder %v605, 2
        %vm607 = vcmp.eq.s32.totalorder %v605, 0
        %v608 = vxor.u32 %v603, 2147483648
        %v609 = vsel %vm607, %v602, %v608
        %vm610 = vcmp.eq.s32.totalorder %v605, 2
        %v611 = vxor.u32 %v602, 2147483648
        %v612 = vsel %vm610, %v611, %v603
        %v613 = vsel %vm606, %v609, %v612
        %v614 = vsel %vm604, nan, %v613
        %v615 = vand.u32 2147483647, %v407
        %vm616 = vcmp.le.f32.partialorder %v615, 0.7853982
        %vm617 = vcmp.lt.s32.totalorder %v407, 0
        %v618 = vand.u32 %v407, 2139095040
        %v619 = vshrl.u32 %v618, 23
        %v620 = vsub.s32 %v619, 127
        %v621 = vand.u32 2147483647, %v407
        %v622 = vand.u32 %v621, 8388607
        %v623 = vor.u32 %v622, 8388608
        %v624 = vsub.s32 0, %v623
        %v625 = vadd.s32 %v620, 1
        %vm626 = vcmp.gt.s32.totalorder %v625, 0
        %v627 = vsel %vm626, %v625, 0
        %v628 = vshrl.u32 %v627, 5
        %v629 = vand.u32 %v627, 31
        %v630 = vsub.s32 32, %v629
        %v631 = vshrl.u32 683565275, %v630
        %v632 = vshll.u32 683565275, %v629
        %v633 = vshrl.u32 2475754826, %v630
        %v634 = vor.u32 %v632, %v633
        %v635 = vshll.u32 2475754826, %v629
        %v636 = vshrl.u32 2131351028, %v630
        %v637 = vor.u32 %v635, %v636
        %v638 = vshll.u32 2131351028, %v629
        %v639 = vshrl.u32 2102212464, %v630
        %v640 = vor.u32 %v638, %v639
        %v641 = vshll.u32 2102212464, %v629
        %v642 = vshrl.u32 920167782, %v630
        %v643 = vor.u32 %v641, %v642
        %v644 = vshll.u32 920167782, %v629
        %v645 = vshrl.u32 1326507024, %v630
        %v646 = vor.u32 %v644, %v645
        %vm647 = vcmp.lt.s32.totalorder %v628, 1
        %vm648 = vcmp.lt.s32.totalorder %v628, 2
        %vm649 = vcmp.lt.s32.totalorder %v628, 3
        %vm650 = vcmp.lt.s32.totalorder %v628, 4
        %v651 = vsel %vm647, %v631, %v634
        %v652 = vsel %vm650, %v640, 2102212464
        %v653 = vsel %vm649, %v637, %v652
        %v654 = vsel %vm648, %v651, %v653
        %v655 = vsel %vm647, %v634, %v637
        %v656 = vsel %vm650, %v643, 920167782
        %v657 = vsel %vm649, %v640, %v656
        %v658 = vsel %vm648, %v655, %v657
        %v659 = vsel %vm647, %v637, %v640
        %v660 = vsel %vm650, %v646, 1326507024
        %v661 = vsel %vm649, %v643, %v660
        %v662 = vsel %vm648, %v659, %v661
        %v663 = vshll.u32 %v623, 8
        %v664 = vmul.u32.u64.compose %v663, %v662
        %v665 = vextract.low.u32 %v664
        %v666 = vextract.high.u32 %v664
        %v667 = vmul.u32.u64.compose %v663, %v658
        %v668 = vextract.low.u32 %v667
        %v669 = vextract.high.u32 %v667
        %v670 = vmul.u32 %v663, %v654
        %v671 = vadd.s32 %v666, %v668
        %vm672 = vc.u32 %v666, %v668
        %v673 = vadd.s32 %v669, 1
        %v674 = vsel %vm672, %v673, %v669
        %v675 = vadd.s32 %v670, %v674
        %v676 = vadd.s32 %v675, 536870912
        %v677 = vshrl.u32 %v676, 30
        %v678 = vshll.u32 %v677, 30
        %v679 = vsub.s32 %v675, %v678
        %vm680 = vcmp.lt.s32.totalorder %v679, 0
        %v681 = vsub.s32 0, %v679
        %v682 = vsel %vm680, %v681, %v679
        %v683 = vclz %v682
        %v684 = vsub.s32 %v683, 2
        %vm685 = vcmp.gt.s32.totalorder 0, %v684
        %v686 = vsel %vm685, 0, %v684
        %v687 = vsub.s32 32, %v686
        %v688 = vshll.u32 %v679, %v686
        %v689 = vshrl.u32 %v671, %v687
        %v690 = vor.u32 %v688, %v689
        %v691 = vsub.s32 4294967266, %v686
        %v692 = vadd.s32 %v691, 127
        %v693 = vshll.u32 %v692, 23
        %v694 = vor.u32 4788187, %v693
        %v695 = vand.u32 2147483647, %v694
        %v697 = vcvt.s32.f32 %v690
        %v698 = vmul.f32 %v697, %v695
        %v699 = vxor.u32 %v698, 2147483648
        %v700 = vsel %vm617, %v699, %v698
        %v701 = vsub.s32 4, %v677
        %v702 = vsel %vm617, %v701, %v677
        %v703 = vsel %vm616, %v407, %v700
        %v704 = vsel %vm616, 0, %v702
        %v705 = vcosq.f32.pop %v703
        %v706 = vsinq.f32.pop %v703
        %vm707 = vweird.f32 %v407
        %v708 = vand.u32 %v704, 3
        %vm709 = vcmp.lt.s32.totalorder %v708, 2
        %vm710 = vcmp.eq.s32.totalorder %v708, 0
        %v711 = vxor.u32 %v706, 2147483648
        %v712 = vsel %vm710, %v705, %v711
        %vm713 = vcmp.eq.s32.totalorder %v708, 2
        %v714 = vxor.u32 %v705, 2147483648
        %v715 = vsel %vm713, %v714, %v706
        %v716 = vsel %vm709, %v712, %v715
        %v717 = vsel %vm707, nan, %v716
        %v718 = vand.u32 2147483647, %v408
        %vm719 = vcmp.le.f32.partialorder %v718, 0.7853982
        %vm720 = vcmp.lt.s32.totalorder %v408, 0
        %v721 = vand.u32 %v408, 2139095040
        %v722 = vshrl.u32 %v721, 23
        %v723 = vsub.s32 %v722, 127
        %v724 = vand.u32 2147483647, %v408
        %v725 = vand.u32 %v724, 8388607
        %v726 = vor.u32 %v725, 8388608
        %v727 = vsub.s32 0, %v726
        %v728 = vadd.s32 %v723, 1
        %vm729 = vcmp.gt.s32.totalorder %v728, 0
        %v730 = vsel %vm729, %v728, 0
        %v731 = vshrl.u32 %v730, 5
        %v732 = vand.u32 %v730, 31
        %v733 = vsub.s32 32, %v732
        %v734 = vshrl.u32 683565275, %v733
        %v735 = vshll.u32 683565275, %v732
        %v736 = vshrl.u32 2475754826, %v733
        %v737 = vor.u32 %v735, %v736
        %v738 = vshll.u32 2475754826, %v732
        %v739 = vshrl.u32 2131351028, %v733
        %v740 = vor.u32 %v738, %v739
        %v741 = vshll.u32 2131351028, %v732
        %v742 = vshrl.u32 2102212464, %v733
        %v743 = vor.u32 %v741, %v742
        %v744 = vshll.u32 2102212464, %v732
        %v745 = vshrl.u32 920167782, %v733
        %v746 = vor.u32 %v744, %v745
        %v747 = vshll.u32 920167782, %v732
        %v748 = vshrl.u32 1326507024, %v733
        %v749 = vor.u32 %v747, %v748
        %vm750 = vcmp.lt.s32.totalorder %v731, 1
        %vm751 = vcmp.lt.s32.totalorder %v731, 2
        %vm752 = vcmp.lt.s32.totalorder %v731, 3
        %vm753 = vcmp.lt.s32.totalorder %v731, 4
        %v754 = vsel %vm750, %v734, %v737
        %v755 = vsel %vm753, %v743, 2102212464
        %v756 = vsel %vm752, %v740, %v755
        %v757 = vsel %vm751, %v754, %v756
        %v758 = vsel %vm750, %v737, %v740
        %v759 = vsel %vm753, %v746, 920167782
        %v760 = vsel %vm752, %v743, %v759
        %v761 = vsel %vm751, %v758, %v760
        %v762 = vsel %vm750, %v740, %v743
        %v763 = vsel %vm753, %v749, 1326507024
        %v764 = vsel %vm752, %v746, %v763
        %v765 = vsel %vm751, %v762, %v764
        %v766 = vshll.u32 %v726, 8
        %v767 = vmul.u32.u64.compose %v766, %v765
        %v768 = vextract.low.u32 %v767
        %v769 = vextract.high.u32 %v767
        %v770 = vmul.u32.u64.compose %v766, %v761
        %v771 = vextract.low.u32 %v770
        %v772 = vextract.high.u32 %v770
        %v773 = vmul.u32 %v766, %v757
        %v774 = vadd.s32 %v769, %v771
        %vm775 = vc.u32 %v769, %v771
        %v776 = vadd.s32 %v772, 1
        %v777 = vsel %vm775, %v776, %v772
        %v778 = vadd.s32 %v773, %v777
        %v779 = vadd.s32 %v778, 536870912
        %v780 = vshrl.u32 %v779, 30
        %v781 = vshll.u32 %v780, 30
        %v782 = vsub.s32 %v778, %v781
        %vm783 = vcmp.lt.s32.totalorder %v782, 0
        %v784 = vsub.s32 0, %v782
        %v785 = vsel %vm783, %v784, %v782
        %v786 = vclz %v785
        %v787 = vsub.s32 %v786, 2
        %vm788 = vcmp.gt.s32.totalorder 0, %v787
        %v789 = vsel %vm788, 0, %v787
        %v790 = vsub.s32 32, %v789
        %v791 = vshll.u32 %v782, %v789
        %v792 = vshrl.u32 %v774, %v790
        %v793 = vor.u32 %v791, %v792
        %v794 = vsub.s32 4294967266, %v789
        %v795 = vadd.s32 %v794, 127
        %v796 = vshll.u32 %v795, 23
        %v797 = vor.u32 4788187, %v796
        %v798 = vand.u32 2147483647, %v797
        %v800 = vcvt.s32.f32 %v793
        %v801 = vmul.f32 %v800, %v798
        %v802 = vxor.u32 %v801, 2147483648
        %v803 = vsel %vm720, %v802, %v801
        %v804 = vsub.s32 4, %v780
        %v805 = vsel %vm720, %v804, %v780
        %v806 = vsel %vm719, %v408, %v803
        %v807 = vsel %vm719, 0, %v805
        %v808 = vcosq.f32.pop %v806
        %v809 = vsinq.f32.pop %v806
        %vm810 = vweird.f32 %v408
        %v811 = vand.u32 %v807, 3
        %vm812 = vcmp.lt.s32.totalorder %v811, 2
        %vm813 = vcmp.eq.s32.totalorder %v811, 0
        %v814 = vxor.u32 %v809, 2147483648
        %v815 = vsel %vm813, %v808, %v814
        %vm816 = vcmp.eq.s32.totalorder %v811, 2
        %v817 = vxor.u32 %v808, 2147483648
        %v818 = vsel %vm816, %v817, %v809
        %v819 = vsel %vm812, %v815, %v818
        %v820 = vsel %vm810, nan, %v819
        %v821 = vld [vmem:[%s3] sm:$0xff]
        %v822 = vld [vmem:[%s3 + $0x8] sm:$0xff]
        %v823 = vld [vmem:[%s3 + $0x10] sm:$0xff]
        %v824 = vld [vmem:[%s3 + $0x18] sm:$0xff]
        %v825 = vld [vmem:[%s3 + $0x20] sm:$0xff]
        %v826 = vld [vmem:[%s3 + $0x28] sm:$0xff]
        %v827 = vld [vmem:[%s3 + $0x30] sm:$0xff]
        %v828 = vld [vmem:[%s3 + $0x38] sm:$0xff]
        %v829 = vld [vmem:[%s3 + $0x40] sm:$0xff]
        %v830 = vld [vmem:[%s3 + $0x48] sm:$0xff]
        %v831 = vld [vmem:[%s3 + $0x50] sm:$0xff]
        %v832 = vld [vmem:[%s3 + $0x58] sm:$0xff]
        %v833 = vld [vmem:[%s3 + $0x60] sm:$0xff]
        %v834 = vld [vmem:[%s3 + $0x68] sm:$0xff]
        %v835 = vld [vmem:[%s3 + $0x70] sm:$0xff]
        %v836 = vld [vmem:[%s3 + $0x78] sm:$0xff]
        %v837 = vld [vmem:[%s3 + $0x80] sm:$0xff]
        %v838 = vld [vmem:[%s3 + $0x88] sm:$0xff]
        %v839 = vld [vmem:[%s3 + $0x90] sm:$0xff]
        %v840 = vld [vmem:[%s3 + $0x98] sm:$0xff]
        %v841 = vld [vmem:[%s3 + $0xa0] sm:$0xff]
        %v842 = vld [vmem:[%s3 + $0xa8] sm:$0xff]
        %v843 = vld [vmem:[%s3 + $0xb0] sm:$0xff]
        %v844 = vld [vmem:[%s3 + $0xb8] sm:$0xff]
        %846 = vset.pattern.permute.xlu0 0
        %847 = vperm.xlu0 %846, %v821
        %v848 = vpop.permute.xlu0 %847
        %851 = vset.pattern.permute.xlu0 0
        %852 = vperm.xlu0 %851, %v822
        %v853 = vpop.permute.xlu0 %852
        %856 = vset.pattern.permute.xlu0 0
        %857 = vperm.xlu0 %856, %v823
        %v858 = vpop.permute.xlu0 %857
        %861 = vset.pattern.permute.xlu0 0
        %862 = vperm.xlu0 %861, %v824
        %v863 = vpop.permute.xlu0 %862
        %866 = vset.pattern.permute.xlu0 0
        %867 = vperm.xlu0 %866, %v825
        %v868 = vpop.permute.xlu0 %867
        %871 = vset.pattern.permute.xlu0 0
        %872 = vperm.xlu0 %871, %v826
        %v873 = vpop.permute.xlu0 %872
        %876 = vset.pattern.permute.xlu0 0
        %877 = vperm.xlu0 %876, %v827
        %v878 = vpop.permute.xlu0 %877
        %881 = vset.pattern.permute.xlu0 0
        %882 = vperm.xlu0 %881, %v828
        %v883 = vpop.permute.xlu0 %882
        %886 = vset.pattern.permute.xlu0 0
        %887 = vperm.xlu0 %886, %v829
        %v888 = vpop.permute.xlu0 %887
        %891 = vset.pattern.permute.xlu0 0
        %892 = vperm.xlu0 %891, %v830
        %v893 = vpop.permute.xlu0 %892
        %896 = vset.pattern.permute.xlu0 0
        %897 = vperm.xlu0 %896, %v831
        %v898 = vpop.permute.xlu0 %897
        %901 = vset.pattern.permute.xlu0 0
        %902 = vperm.xlu0 %901, %v832
        %v903 = vpop.permute.xlu0 %902
        %906 = vset.pattern.permute.xlu0 0
        %907 = vperm.xlu0 %906, %v833
        %v908 = vpop.permute.xlu0 %907
        %911 = vset.pattern.permute.xlu0 0
        %912 = vperm.xlu0 %911, %v834
        %v913 = vpop.permute.xlu0 %912
        %916 = vset.pattern.permute.xlu0 0
        %917 = vperm.xlu0 %916, %v835
        %v918 = vpop.permute.xlu0 %917
        %921 = vset.pattern.permute.xlu0 0
        %922 = vperm.xlu0 %921, %v836
        %v923 = vpop.permute.xlu0 %922
        %926 = vset.pattern.permute.xlu0 0
        %927 = vperm.xlu0 %926, %v837
        %v928 = vpop.permute.xlu0 %927
        %931 = vset.pattern.permute.xlu0 0
        %932 = vperm.xlu0 %931, %v838
        %v933 = vpop.permute.xlu0 %932
        %936 = vset.pattern.permute.xlu0 0
        %937 = vperm.xlu0 %936, %v839
        %v938 = vpop.permute.xlu0 %937
        %941 = vset.pattern.permute.xlu0 0
        %942 = vperm.xlu0 %941, %v840
        %v943 = vpop.permute.xlu0 %942
        %946 = vset.pattern.permute.xlu0 0
        %947 = vperm.xlu0 %946, %v841
        %v948 = vpop.permute.xlu0 %947
        %951 = vset.pattern.permute.xlu0 0
        %952 = vperm.xlu0 %951, %v842
        %v953 = vpop.permute.xlu0 %952
        %956 = vset.pattern.permute.xlu0 0
        %957 = vperm.xlu0 %956, %v843
        %v958 = vpop.permute.xlu0 %957
        %961 = vset.pattern.permute.xlu0 0
        %962 = vperm.xlu0 %961, %v844
        %v963 = vpop.permute.xlu0 %962
        %v966 = vlaneseq
        %v967 = vshrl.u32 %v966, 7
        %v968 = vsub.s32 0, %v967
        %v969 = vrot.slane %v363, %v968
        %v970 = vlaneseq
        %v971 = vshrl.u32 %v970, 7
        %v972 = vsub.s32 1, %v971
        %v973 = vrot.slane %v363, %v972
        %v976 = vmul.f32 %v848, %v969
        %v977 = vmul.f32 %v848, %v973
        %v978 = vmul.f32 %v853, %v969
        %v979 = vmul.f32 %v853, %v973
        %v980 = vmul.f32 %v858, %v969
        %v981 = vmul.f32 %v858, %v973
        %v982 = vmul.f32 %v863, %v969
        %v983 = vmul.f32 %v863, %v973
        %v984 = vmul.f32 %v868, %v969
        %v985 = vmul.f32 %v868, %v973
        %v986 = vmul.f32 %v873, %v969
        %v987 = vmul.f32 %v873, %v973
        %v988 = vmul.f32 %v878, %v969
        %v989 = vmul.f32 %v878, %v973
        %v990 = vmul.f32 %v883, %v969
        %v991 = vmul.f32 %v883, %v973
        %v992 = vmul.f32 %v888, %v969
        %v993 = vmul.f32 %v888, %v973
        %v994 = vmul.f32 %v893, %v969
        %v995 = vmul.f32 %v893, %v973
        %v996 = vmul.f32 %v898, %v969
        %v997 = vmul.f32 %v898, %v973
        %v998 = vmul.f32 %v903, %v969
        %v999 = vmul.f32 %v903, %v973
        %v1000 = vmul.f32 %v908, %v969
        %v1001 = vmul.f32 %v908, %v973
        %v1002 = vmul.f32 %v913, %v969
        %v1003 = vmul.f32 %v913, %v973
        %v1004 = vmul.f32 %v918, %v969
        %v1005 = vmul.f32 %v918, %v973
        %v1006 = vmul.f32 %v923, %v969
        %v1007 = vmul.f32 %v923, %v973
        %v1008 = vmul.f32 %v928, %v969
        %v1009 = vmul.f32 %v928, %v973
        %v1010 = vmul.f32 %v933, %v969
        %v1011 = vmul.f32 %v933, %v973
        %v1012 = vmul.f32 %v938, %v969
        %v1013 = vmul.f32 %v938, %v973
        %v1014 = vmul.f32 %v943, %v969
        %v1015 = vmul.f32 %v943, %v973
        %v1016 = vmul.f32 %v948, %v969
        %v1017 = vmul.f32 %v948, %v973
        %v1018 = vmul.f32 %v953, %v969
        %v1019 = vmul.f32 %v953, %v973
        %v1020 = vmul.f32 %v958, %v969
        %v1021 = vmul.f32 %v958, %v973
        %v1022 = vmul.f32 %v963, %v969
        %v1023 = vmul.f32 %v963, %v973
        %v1024 = vld [vmem:[%s5] sm:$0xff]
        %v1025 = vld [vmem:[%s5 + $0x8] sm:$0xff]
        %v1026 = vld [vmem:[%s5 + $0x10] sm:$0xff]
        %v1027 = vld [vmem:[%s5 + $0x18] sm:$0xff]
        %v1028 = vld [vmem:[%s5 + $0x20] sm:$0xff]
        %v1029 = vld [vmem:[%s5 + $0x28] sm:$0xff]
        %v1030 = vld [vmem:[%s5 + $0x30] sm:$0xff]
        %v1031 = vld [vmem:[%s5 + $0x38] sm:$0xff]
        %v1032 = vld [vmem:[%s5 + $0x40] sm:$0xff]
        %v1033 = vld [vmem:[%s5 + $0x48] sm:$0xff]
        %v1034 = vld [vmem:[%s5 + $0x50] sm:$0xff]
        %v1035 = vld [vmem:[%s5 + $0x58] sm:$0xff]
        %v1036 = vld [vmem:[%s5 + $0x60] sm:$0xff]
        %v1037 = vld [vmem:[%s5 + $0x68] sm:$0xff]
        %v1038 = vld [vmem:[%s5 + $0x70] sm:$0xff]
        %v1039 = vld [vmem:[%s5 + $0x78] sm:$0xff]
        %v1040 = vld [vmem:[%s5 + $0x80] sm:$0xff]
        %v1041 = vld [vmem:[%s5 + $0x88] sm:$0xff]
        %v1042 = vld [vmem:[%s5 + $0x90] sm:$0xff]
        %v1043 = vld [vmem:[%s5 + $0x98] sm:$0xff]
        %v1044 = vld [vmem:[%s5 + $0xa0] sm:$0xff]
        %v1045 = vld [vmem:[%s5 + $0xa8] sm:$0xff]
        %v1046 = vld [vmem:[%s5 + $0xb0] sm:$0xff]
        %v1047 = vld [vmem:[%s5 + $0xb8] sm:$0xff]
        %vm1048 = vcmask 80896
        %v1050 = vsel %vm1048, %v1024, 0
        %v1053 = vsel %vm1048, %v1025, 0
        %v1056 = vsel %vm1048, %v1026, 0
        %v1059 = vsel %vm1048, %v1027, 0
        %v1062 = vsel %vm1048, %v1028, 0
        %v1065 = vsel %vm1048, %v1029, 0
        %v1068 = vsel %vm1048, %v1030, 0
        %v1071 = vsel %vm1048, %v1031, 0
        %v1074 = vsel %vm1048, %v1032, 0
        %v1077 = vsel %vm1048, %v1033, 0
        %v1080 = vsel %vm1048, %v1034, 0
        %v1083 = vsel %vm1048, %v1035, 0
        %v1086 = vsel %vm1048, %v1036, 0
        %v1089 = vsel %vm1048, %v1037, 0
        %v1092 = vsel %vm1048, %v1038, 0
        %v1095 = vsel %vm1048, %v1039, 0
        %v1098 = vsel %vm1048, %v1040, 0
        %v1101 = vsel %vm1048, %v1041, 0
        %v1104 = vsel %vm1048, %v1042, 0
        %v1107 = vsel %vm1048, %v1043, 0
        %v1110 = vsel %vm1048, %v1044, 0
        %v1113 = vsel %vm1048, %v1045, 0
        %v1116 = vsel %vm1048, %v1046, 0
        %v1119 = vsel %vm1048, %v1047, 0
        %vm1121 = vcmask 1041408
        %v1123 = vsel %vm1121, %v717, 0
        %v1126 = vsel %vm1121, %v820, 0
        %1128 = vmatprep.subr.mxu0 0.0
        %1129 = vmatpush1.msra.mxu0 0.0
        %1130 = vmatprep.subr.mxu0 0.0
        %1131 = vmatpush1.msra.mxu0 0.0
        %1132 = vmatprep.subr.mxu0 0.0
        %1133 = vmatpush1.msra.mxu0 0.0
        %1134 = vmatprep.subr.mxu0 0.0
        %1135 = vmatpush1.msra.mxu0 0.0
        %1136 = vmatprep.subr.mxu0 0.0
        %1137 = vmatpush1.msra.mxu0 0.0
        %1138 = vmatprep.subr.mxu0 0.0
        %1139 = vmatpush1.msra.mxu0 0.0
        %1140 = vmatprep.subr.mxu0 0.0
        %1141 = vmatpush1.msra.mxu0 0.0
        %1142 = vmatprep.subr.mxu0 0.0
        %1143 = vmatpush1.msra.mxu0 0.0
        %1144 = vmatprep.subr.mxu0 0.0
        %1145 = vmatpush1.msra.mxu0 0.0
        %1146 = vmatprep.subr.mxu0 0.0
        %1147 = vmatpush1.msra.mxu0 0.0
        %1148 = vmatprep.subr.mxu0 0.0
        %1149 = vmatpush1.msra.mxu0 0.0
        %1150 = vmatprep.subr.mxu0 0.0
        %1151 = vmatpush1.msra.mxu0 0.0
        %1152 = vmatprep.subr.mxu0 0.0
        %1153 = vmatpush1.msra.mxu0 0.0
        %1154 = vmatprep.subr.mxu0 0.0
        %1155 = vmatpush1.msra.mxu0 0.0
        %1156 = vmatprep.subr.mxu0 %v1126
        %1157 = vmatpush1.msra.mxu0 %v1123
        %1158 = vmatprep.subr.mxu0 %v614
        %1159 = vmatpush1.msra.mxu0 %v511
        %1160 = vmatprep.subr.mxu0 0.0
        %1161 = vmatpush2.msra.mxu0 0.0
        %1162 = vmatprep.subr.mxu0 0.0
        %1163 = vmatpush2.msra.mxu0 0.0
        %1164 = vmatprep.subr.mxu0 0.0
        %1165 = vmatpush2.msra.mxu0 0.0
        %1166 = vmatprep.subr.mxu0 0.0
        %1167 = vmatpush2.msra.mxu0 0.0
        %1168 = vmatprep.subr.mxu0 0.0
        %1169 = vmatpush2.msra.mxu0 0.0
        %1170 = vmatprep.subr.mxu0 0.0
        %1171 = vmatpush2.msra.mxu0 0.0
        %1172 = vmatprep.subr.mxu0 0.0
        %1173 = vmatpush2.msra.mxu0 0.0
        %1174 = vmatprep.subr.mxu0 0.0
        %1175 = vmatpush2.msra.mxu0 0.0
        %1176 = vmatprep.subr.mxu0 0.0
        %1177 = vmatpush2.msra.mxu0 0.0
        %1178 = vmatprep.subr.mxu0 0.0
        %1179 = vmatpush2.msra.mxu0 0.0
        %1180 = vmatprep.subr.mxu0 0.0
        %1181 = vmatpush2.msra.mxu0 0.0
        %1182 = vmatprep.subr.mxu0 0.0
        %1183 = vmatpush2.msra.mxu0 0.0
        %1184 = vmatprep.subr.mxu0 0.0
        %1185 = vmatpush2.msra.mxu0 0.0
        %1186 = vmatprep.subr.mxu0 0.0
        %1187 = vmatpush2.msra.mxu0 0.0
        %1188 = vmatprep.subr.mxu0 0.0
        %1189 = vmatpush2.msra.mxu0 0.0
        %1190 = vmatprep.subr.mxu0 0.0
        %1191 = vmatpush2.msra.mxu0 0.0
        %1192 = vmatprep.mubr.f32.mxu0 0.0
        %1193 = vmatmul.mubr.f32.gmra.mxu0 %v1050
        %v1194 = vpop.f32.mrf.mxu0
        %v1195 = vadd.f32 0.0, %v1194
        %v1196 = vpop.f32.mrf.mxu0
        %v1197 = vadd.f32 0.0, %v1196
        %1198 = vmatprep.mubr.f32.mxu0 0.0
        %1199 = vmatmul.mubr.f32.gmra.mxu0 %v1053
        %v1200 = vpop.f32.mrf.mxu0
        %v1201 = vadd.f32 0.0, %v1200
        %v1202 = vpop.f32.mrf.mxu0
        %v1203 = vadd.f32 0.0, %v1202
        %1204 = vmatprep.mubr.f32.mxu0 0.0
        %1205 = vmatmul.mubr.f32.gmra.mxu0 %v1056
        %v1206 = vpop.f32.mrf.mxu0
        %v1207 = vadd.f32 0.0, %v1206
        %v1208 = vpop.f32.mrf.mxu0
        %v1209 = vadd.f32 0.0, %v1208
        %1210 = vmatprep.mubr.f32.mxu0 0.0
        %1211 = vmatmul.mubr.f32.gmra.mxu0 %v1059
        %v1212 = vpop.f32.mrf.mxu0
        %v1213 = vadd.f32 0.0, %v1212
        %v1214 = vpop.f32.mrf.mxu0
        %v1215 = vadd.f32 0.0, %v1214
        %1216 = vmatprep.mubr.f32.mxu0 0.0
        %1217 = vmatmul.mubr.f32.gmra.mxu0 %v1062
        %v1218 = vpop.f32.mrf.mxu0
        %v1219 = vadd.f32 0.0, %v1218
        %v1220 = vpop.f32.mrf.mxu0
        %v1221 = vadd.f32 0.0, %v1220
        %1222 = vmatprep.mubr.f32.mxu0 0.0
        %1223 = vmatmul.mubr.f32.gmra.mxu0 %v1065
        %v1224 = vpop.f32.mrf.mxu0
        %v1225 = vadd.f32 0.0, %v1224
        %v1226 = vpop.f32.mrf.mxu0
        %v1227 = vadd.f32 0.0, %v1226
        %1228 = vmatprep.mubr.f32.mxu0 0.0
        %1229 = vmatmul.mubr.f32.gmra.mxu0 %v1068
        %v1230 = vpop.f32.mrf.mxu0
        %v1231 = vadd.f32 0.0, %v1230
        %v1232 = vpop.f32.mrf.mxu0
        %v1233 = vadd.f32 0.0, %v1232
        %1234 = vmatprep.mubr.f32.mxu0 0.0
        %1235 = vmatmul.mubr.f32.gmra.mxu0 %v1071
        %v1236 = vpop.f32.mrf.mxu0
        %v1237 = vadd.f32 0.0, %v1236
        %v1238 = vpop.f32.mrf.mxu0
        %v1239 = vadd.f32 0.0, %v1238
        %1240 = vmatprep.mubr.f32.mxu0 0.0
        %1241 = vmatmul.mubr.f32.gmra.mxu0 %v1074
        %v1242 = vpop.f32.mrf.mxu0
        %v1243 = vadd.f32 0.0, %v1242
        %v1244 = vpop.f32.mrf.mxu0
        %v1245 = vadd.f32 0.0, %v1244
        %1246 = vmatprep.mubr.f32.mxu0 0.0
        %1247 = vmatmul.mubr.f32.gmra.mxu0 %v1077
        %v1248 = vpop.f32.mrf.mxu0
        %v1249 = vadd.f32 0.0, %v1248
        %v1250 = vpop.f32.mrf.mxu0
        %v1251 = vadd.f32 0.0, %v1250
        %1252 = vmatprep.mubr.f32.mxu0 0.0
        %1253 = vmatmul.mubr.f32.gmra.mxu0 %v1080
        %v1254 = vpop.f32.mrf.mxu0
        %v1255 = vadd.f32 0.0, %v1254
        %v1256 = vpop.f32.mrf.mxu0
        %v1257 = vadd.f32 0.0, %v1256
        %1258 = vmatprep.mubr.f32.mxu0 0.0
        %1259 = vmatmul.mubr.f32.gmra.mxu0 %v1083
        %v1260 = vpop.f32.mrf.mxu0
        %v1261 = vadd.f32 0.0, %v1260
        %v1262 = vpop.f32.mrf.mxu0
        %v1263 = vadd.f32 0.0, %v1262
        %1264 = vmatprep.mubr.f32.mxu0 0.0
        %1265 = vmatmul.mubr.f32.gmra.mxu0 %v1086
        %v1266 = vpop.f32.mrf.mxu0
        %v1267 = vadd.f32 0.0, %v1266
        %v1268 = vpop.f32.mrf.mxu0
        %v1269 = vadd.f32 0.0, %v1268
        %1270 = vmatprep.mubr.f32.mxu0 0.0
        %1271 = vmatmul.mubr.f32.gmra.mxu0 %v1089
        %v1272 = vpop.f32.mrf.mxu0
        %v1273 = vadd.f32 0.0, %v1272
        %v1274 = vpop.f32.mrf.mxu0
        %v1275 = vadd.f32 0.0, %v1274
        %1276 = vmatprep.mubr.f32.mxu0 0.0
        %1277 = vmatmul.mubr.f32.gmra.mxu0 %v1092
        %v1278 = vpop.f32.mrf.mxu0
        %v1279 = vadd.f32 0.0, %v1278
        %v1280 = vpop.f32.mrf.mxu0
        %v1281 = vadd.f32 0.0, %v1280
        %1282 = vmatprep.mubr.f32.mxu0 0.0
        %1283 = vmatmul.mubr.f32.gmra.mxu0 %v1095
        %v1284 = vpop.f32.mrf.mxu0
        %v1285 = vadd.f32 0.0, %v1284
        %v1286 = vpop.f32.mrf.mxu0
        %v1287 = vadd.f32 0.0, %v1286
        %1288 = vmatprep.mubr.f32.mxu0 0.0
        %1289 = vmatmul.mubr.f32.gmra.mxu0 %v1098
        %v1290 = vpop.f32.mrf.mxu0
        %v1291 = vadd.f32 0.0, %v1290
        %v1292 = vpop.f32.mrf.mxu0
        %v1293 = vadd.f32 0.0, %v1292
        %1294 = vmatprep.mubr.f32.mxu0 0.0
        %1295 = vmatmul.mubr.f32.gmra.mxu0 %v1101
        %v1296 = vpop.f32.mrf.mxu0
        %v1297 = vadd.f32 0.0, %v1296
        %v1298 = vpop.f32.mrf.mxu0
        %v1299 = vadd.f32 0.0, %v1298
        %1300 = vmatprep.mubr.f32.mxu0 0.0
        %1301 = vmatmul.mubr.f32.gmra.mxu0 %v1104
        %v1302 = vpop.f32.mrf.mxu0
        %v1303 = vadd.f32 0.0, %v1302
        %v1304 = vpop.f32.mrf.mxu0
        %v1305 = vadd.f32 0.0, %v1304
        %1306 = vmatprep.mubr.f32.mxu0 0.0
        %1307 = vmatmul.mubr.f32.gmra.mxu0 %v1107
        %v1308 = vpop.f32.mrf.mxu0
        %v1309 = vadd.f32 0.0, %v1308
        %v1310 = vpop.f32.mrf.mxu0
        %v1311 = vadd.f32 0.0, %v1310
        %1312 = vmatprep.mubr.f32.mxu0 0.0
        %1313 = vmatmul.mubr.f32.gmra.mxu0 %v1110
        %v1314 = vpop.f32.mrf.mxu0
        %v1315 = vadd.f32 0.0, %v1314
        %v1316 = vpop.f32.mrf.mxu0
        %v1317 = vadd.f32 0.0, %v1316
        %1318 = vmatprep.mubr.f32.mxu0 0.0
        %1319 = vmatmul.mubr.f32.gmra.mxu0 %v1113
        %v1320 = vpop.f32.mrf.mxu0
        %v1321 = vadd.f32 0.0, %v1320
        %v1322 = vpop.f32.mrf.mxu0
        %v1323 = vadd.f32 0.0, %v1322
        %1324 = vmatprep.mubr.f32.mxu0 0.0
        %1325 = vmatmul.mubr.f32.gmra.mxu0 %v1116
        %v1326 = vpop.f32.mrf.mxu0
        %v1327 = vadd.f32 0.0, %v1326
        %v1328 = vpop.f32.mrf.mxu0
        %v1329 = vadd.f32 0.0, %v1328
        %1330 = vmatprep.mubr.f32.mxu0 0.0
        %1331 = vmatmul.mubr.f32.gmra.mxu0 %v1119
        %v1332 = vpop.f32.mrf.mxu0
        %v1333 = vadd.f32 0.0, %v1332
        %v1334 = vpop.f32.mrf.mxu0
        %v1335 = vadd.f32 0.0, %v1334
        %1336 = vdwg.mxu0
        %v1337 = vadd.f32 %v976, %v1195
        %v1338 = vadd.f32 %v977, %v1197
        %v1339 = vadd.f32 %v978, %v1201
        %v1340 = vadd.f32 %v979, %v1203
        %v1341 = vadd.f32 %v980, %v1207
        %v1342 = vadd.f32 %v981, %v1209
        %v1343 = vadd.f32 %v982, %v1213
        %v1344 = vadd.f32 %v983, %v1215
        %v1345 = vadd.f32 %v984, %v1219
        %v1346 = vadd.f32 %v985, %v1221
        %v1347 = vadd.f32 %v986, %v1225
        %v1348 = vadd.f32 %v987, %v1227
        %v1349 = vadd.f32 %v988, %v1231
        %v1350 = vadd.f32 %v989, %v1233
        %v1351 = vadd.f32 %v990, %v1237
        %v1352 = vadd.f32 %v991, %v1239
        %v1353 = vadd.f32 %v992, %v1243
        %v1354 = vadd.f32 %v993, %v1245
        %v1355 = vadd.f32 %v994, %v1249
        %v1356 = vadd.f32 %v995, %v1251
        %v1357 = vadd.f32 %v996, %v1255
        %v1358 = vadd.f32 %v997, %v1257
        %v1359 = vadd.f32 %v998, %v1261
        %v1360 = vadd.f32 %v999, %v1263
        %v1361 = vadd.f32 %v1000, %v1267
        %v1362 = vadd.f32 %v1001, %v1269
        %v1363 = vadd.f32 %v1002, %v1273
        %v1364 = vadd.f32 %v1003, %v1275
        %v1365 = vadd.f32 %v1004, %v1279
        %v1366 = vadd.f32 %v1005, %v1281
        %v1367 = vadd.f32 %v1006, %v1285
        %v1368 = vadd.f32 %v1007, %v1287
        %v1369 = vadd.f32 %v1008, %v1291
        %v1370 = vadd.f32 %v1009, %v1293
        %v1371 = vadd.f32 %v1010, %v1297
        %v1372 = vadd.f32 %v1011, %v1299
        %v1373 = vadd.f32 %v1012, %v1303
        %v1374 = vadd.f32 %v1013, %v1305
        %v1375 = vadd.f32 %v1014, %v1309
        %v1376 = vadd.f32 %v1015, %v1311
        %v1377 = vadd.f32 %v1016, %v1315
        %v1378 = vadd.f32 %v1017, %v1317
        %v1379 = vadd.f32 %v1018, %v1321
        %v1380 = vadd.f32 %v1019, %v1323
        %v1381 = vadd.f32 %v1020, %v1327
        %v1382 = vadd.f32 %v1021, %v1329
        %v1383 = vadd.f32 %v1022, %v1333
        %v1384 = vadd.f32 %v1023, %v1335
        %v1385 = vld [vmem:[%s4] sm:$0xff]
        %v1386 = vld [vmem:[%s4 + $0x8] sm:$0xff]
        %v1387 = vld [vmem:[%s4 + $0x10] sm:$0xff]
        %v1388 = vld [vmem:[%s4 + $0x18] sm:$0xff]
        %v1389 = vld [vmem:[%s4 + $0x20] sm:$0xff]
        %v1390 = vld [vmem:[%s4 + $0x28] sm:$0xff]
        %v1391 = vld [vmem:[%s4 + $0x30] sm:$0xff]
        %v1392 = vld [vmem:[%s4 + $0x38] sm:$0xff]
        %v1393 = vld [vmem:[%s4 + $0x40] sm:$0xff]
        %v1394 = vld [vmem:[%s4 + $0x48] sm:$0xff]
        %v1395 = vld [vmem:[%s4 + $0x50] sm:$0xff]
        %v1396 = vld [vmem:[%s4 + $0x58] sm:$0xff]
        %v1397 = vld [vmem:[%s4 + $0x60] sm:$0xff]
        %v1398 = vld [vmem:[%s4 + $0x68] sm:$0xff]
        %v1399 = vld [vmem:[%s4 + $0x70] sm:$0xff]
        %v1400 = vld [vmem:[%s4 + $0x78] sm:$0xff]
        %v1401 = vld [vmem:[%s4 + $0x80] sm:$0xff]
        %v1402 = vld [vmem:[%s4 + $0x88] sm:$0xff]
        %v1403 = vld [vmem:[%s4 + $0x90] sm:$0xff]
        %v1404 = vld [vmem:[%s4 + $0x98] sm:$0xff]
        %v1405 = vld [vmem:[%s4 + $0xa0] sm:$0xff]
        %v1406 = vld [vmem:[%s4 + $0xa8] sm:$0xff]
        %v1407 = vld [vmem:[%s4 + $0xb0] sm:$0xff]
        %v1408 = vld [vmem:[%s4 + $0xb8] sm:$0xff]
        %1410 = vset.pattern.permute.xlu0 0
        %1411 = vperm.xlu0 %1410, %v1385
        %v1412 = vpop.permute.xlu0 %1411
        %1415 = vset.pattern.permute.xlu0 0
        %1416 = vperm.xlu0 %1415, %v1386
        %v1417 = vpop.permute.xlu0 %1416
        %1420 = vset.pattern.permute.xlu0 0
        %1421 = vperm.xlu0 %1420, %v1387
        %v1422 = vpop.permute.xlu0 %1421
        %1425 = vset.pattern.permute.xlu0 0
        %1426 = vperm.xlu0 %1425, %v1388
        %v1427 = vpop.permute.xlu0 %1426
        %1430 = vset.pattern.permute.xlu0 0
        %1431 = vperm.xlu0 %1430, %v1389
        %v1432 = vpop.permute.xlu0 %1431
        %1435 = vset.pattern.permute.xlu0 0
        %1436 = vperm.xlu0 %1435, %v1390
        %v1437 = vpop.permute.xlu0 %1436
        %1440 = vset.pattern.permute.xlu0 0
        %1441 = vperm.xlu0 %1440, %v1391
        %v1442 = vpop.permute.xlu0 %1441
        %1445 = vset.pattern.permute.xlu0 0
        %1446 = vperm.xlu0 %1445, %v1392
        %v1447 = vpop.permute.xlu0 %1446
        %1450 = vset.pattern.permute.xlu0 0
        %1451 = vperm.xlu0 %1450, %v1393
        %v1452 = vpop.permute.xlu0 %1451
        %1455 = vset.pattern.permute.xlu0 0
        %1456 = vperm.xlu0 %1455, %v1394
        %v1457 = vpop.permute.xlu0 %1456
        %1460 = vset.pattern.permute.xlu0 0
        %1461 = vperm.xlu0 %1460, %v1395
        %v1462 = vpop.permute.xlu0 %1461
        %1465 = vset.pattern.permute.xlu0 0
        %1466 = vperm.xlu0 %1465, %v1396
        %v1467 = vpop.permute.xlu0 %1466
        %1470 = vset.pattern.permute.xlu0 0
        %1471 = vperm.xlu0 %1470, %v1397
        %v1472 = vpop.permute.xlu0 %1471
        %1475 = vset.pattern.permute.xlu0 0
        %1476 = vperm.xlu0 %1475, %v1398
        %v1477 = vpop.permute.xlu0 %1476
        %1480 = vset.pattern.permute.xlu0 0
        %1481 = vperm.xlu0 %1480, %v1399
        %v1482 = vpop.permute.xlu0 %1481
        %1485 = vset.pattern.permute.xlu0 0
        %1486 = vperm.xlu0 %1485, %v1400
        %v1487 = vpop.permute.xlu0 %1486
        %1490 = vset.pattern.permute.xlu0 0
        %1491 = vperm.xlu0 %1490, %v1401
        %v1492 = vpop.permute.xlu0 %1491
        %1495 = vset.pattern.permute.xlu0 0
        %1496 = vperm.xlu0 %1495, %v1402
        %v1497 = vpop.permute.xlu0 %1496
        %1500 = vset.pattern.permute.xlu0 0
        %1501 = vperm.xlu0 %1500, %v1403
        %v1502 = vpop.permute.xlu0 %1501
        %1505 = vset.pattern.permute.xlu0 0
        %1506 = vperm.xlu0 %1505, %v1404
        %v1507 = vpop.permute.xlu0 %1506
        %1510 = vset.pattern.permute.xlu0 0
        %1511 = vperm.xlu0 %1510, %v1405
        %v1512 = vpop.permute.xlu0 %1511
        %1515 = vset.pattern.permute.xlu0 0
        %1516 = vperm.xlu0 %1515, %v1406
        %v1517 = vpop.permute.xlu0 %1516
        %1520 = vset.pattern.permute.xlu0 0
        %1521 = vperm.xlu0 %1520, %v1407
        %v1522 = vpop.permute.xlu0 %1521
        %1525 = vset.pattern.permute.xlu0 0
        %1526 = vperm.xlu0 %1525, %v1408
        %v1527 = vpop.permute.xlu0 %1526
        %v1529 = vadd.f32 %v1337, %v1412
        %v1530 = vadd.f32 %v1338, %v1412
        %v1531 = vadd.f32 %v1339, %v1417
        %v1532 = vadd.f32 %v1340, %v1417
        %v1533 = vadd.f32 %v1341, %v1422
        %v1534 = vadd.f32 %v1342, %v1422
        %v1535 = vadd.f32 %v1343, %v1427
        %v1536 = vadd.f32 %v1344, %v1427
        %v1537 = vadd.f32 %v1345, %v1432
        %v1538 = vadd.f32 %v1346, %v1432
        %v1539 = vadd.f32 %v1347, %v1437
        %v1540 = vadd.f32 %v1348, %v1437
        %v1541 = vadd.f32 %v1349, %v1442
        %v1542 = vadd.f32 %v1350, %v1442
        %v1543 = vadd.f32 %v1351, %v1447
        %v1544 = vadd.f32 %v1352, %v1447
        %v1545 = vadd.f32 %v1353, %v1452
        %v1546 = vadd.f32 %v1354, %v1452
        %v1547 = vadd.f32 %v1355, %v1457
        %v1548 = vadd.f32 %v1356, %v1457
        %v1549 = vadd.f32 %v1357, %v1462
        %v1550 = vadd.f32 %v1358, %v1462
        %v1551 = vadd.f32 %v1359, %v1467
        %v1552 = vadd.f32 %v1360, %v1467
        %v1553 = vadd.f32 %v1361, %v1472
        %v1554 = vadd.f32 %v1362, %v1472
        %v1555 = vadd.f32 %v1363, %v1477
        %v1556 = vadd.f32 %v1364, %v1477
        %v1557 = vadd.f32 %v1365, %v1482
        %v1558 = vadd.f32 %v1366, %v1482
        %v1559 = vadd.f32 %v1367, %v1487
        %v1560 = vadd.f32 %v1368, %v1487
        %v1561 = vadd.f32 %v1369, %v1492
        %v1562 = vadd.f32 %v1370, %v1492
        %v1563 = vadd.f32 %v1371, %v1497
        %v1564 = vadd.f32 %v1372, %v1497
        %v1565 = vadd.f32 %v1373, %v1502
        %v1566 = vadd.f32 %v1374, %v1502
        %v1567 = vadd.f32 %v1375, %v1507
        %v1568 = vadd.f32 %v1376, %v1507
        %v1569 = vadd.f32 %v1377, %v1512
        %v1570 = vadd.f32 %v1378, %v1512
        %v1571 = vadd.f32 %v1379, %v1517
        %v1572 = vadd.f32 %v1380, %v1517
        %v1573 = vadd.f32 %v1381, %v1522
        %v1574 = vadd.f32 %v1382, %v1522
        %v1575 = vadd.f32 %v1383, %v1527
        %v1576 = vadd.f32 %v1384, %v1527
        %v1577 = vtanh.pop %v1529
        %v1578 = vtanh.pop %v1530
        %v1579 = vtanh.pop %v1531
        %v1580 = vtanh.pop %v1532
        %v1581 = vtanh.pop %v1533
        %v1582 = vtanh.pop %v1534
        %v1583 = vtanh.pop %v1535
        %v1584 = vtanh.pop %v1536
        %v1585 = vtanh.pop %v1537
        %v1586 = vtanh.pop %v1538
        %v1587 = vtanh.pop %v1539
        %v1588 = vtanh.pop %v1540
        %v1589 = vtanh.pop %v1541
        %v1590 = vtanh.pop %v1542
        %v1591 = vtanh.pop %v1543
        %v1592 = vtanh.pop %v1544
        %v1593 = vtanh.pop %v1545
        %v1594 = vtanh.pop %v1546
        %v1595 = vtanh.pop %v1547
        %v1596 = vtanh.pop %v1548
        %v1597 = vtanh.pop %v1549
        %v1598 = vtanh.pop %v1550
        %v1599 = vtanh.pop %v1551
        %v1600 = vtanh.pop %v1552
        %v1601 = vtanh.pop %v1553
        %v1602 = vtanh.pop %v1554
        %v1603 = vtanh.pop %v1555
        %v1604 = vtanh.pop %v1556
        %v1605 = vtanh.pop %v1557
        %v1606 = vtanh.pop %v1558
        %v1607 = vtanh.pop %v1559
        %v1608 = vtanh.pop %v1560
        %v1609 = vtanh.pop %v1561
        %v1610 = vtanh.pop %v1562
        %v1611 = vtanh.pop %v1563
        %v1612 = vtanh.pop %v1564
        %v1613 = vtanh.pop %v1565
        %v1614 = vtanh.pop %v1566
        %v1615 = vtanh.pop %v1567
        %v1616 = vtanh.pop %v1568
        %v1617 = vtanh.pop %v1569
        %v1618 = vtanh.pop %v1570
        %v1619 = vtanh.pop %v1571
        %v1620 = vtanh.pop %v1572
        %v1621 = vtanh.pop %v1573
        %v1622 = vtanh.pop %v1574
        %v1623 = vtanh.pop %v1575
        %v1624 = vtanh.pop %v1576
        %v1625 = vsub.f32 %v1593, %v1577
        %v1626 = vsub.f32 %v1594, %v1578
        %v1627 = vsub.f32 %v1595, %v1579
        %v1628 = vsub.f32 %v1596, %v1580
        %v1629 = vsub.f32 %v1597, %v1581
        %v1630 = vsub.f32 %v1598, %v1582
        %v1631 = vsub.f32 %v1599, %v1583
        %v1632 = vsub.f32 %v1600, %v1584
        %v1633 = vsub.f32 %v1601, %v1585
        %v1634 = vsub.f32 %v1602, %v1586
        %v1635 = vsub.f32 %v1603, %v1587
        %v1636 = vsub.f32 %v1604, %v1588
        %v1637 = vsub.f32 %v1605, %v1589
        %v1638 = vsub.f32 %v1606, %v1590
        %v1639 = vsub.f32 %v1607, %v1591
        %v1640 = vsub.f32 %v1608, %v1592
        %v1641 = vld [vmem:[%s6] sm:$0xff]
        %v1642 = vld [vmem:[%s6 + $0x8] sm:$0xff]
        %v1643 = vld [vmem:[%s6 + $0x10] sm:$0xff]
        %v1644 = vld [vmem:[%s6 + $0x18] sm:$0xff]
        %v1645 = vld [vmem:[%s6 + $0x20] sm:$0xff]
        %v1646 = vld [vmem:[%s6 + $0x28] sm:$0xff]
        %v1647 = vld [vmem:[%s6 + $0x30] sm:$0xff]
        %v1648 = vld [vmem:[%s6 + $0x38] sm:$0xff]
        %v1649 = vld [vmem:[%s7] sm:$0xff]
        %v1650 = vld [vmem:[%s7 + $0x8] sm:$0xff]
        %v1651 = vld [vmem:[%s7 + $0x10] sm:$0xff]
        %v1652 = vld [vmem:[%s7 + $0x18] sm:$0xff]
        %v1653 = vld [vmem:[%s7 + $0x20] sm:$0xff]
        %v1654 = vld [vmem:[%s7 + $0x28] sm:$0xff]
        %v1655 = vld [vmem:[%s7 + $0x30] sm:$0xff]
        %v1656 = vld [vmem:[%s7 + $0x38] sm:$0xff]
        %1658 = vset.pattern.permute.xlu0 0
        %1659 = vperm.xlu0 %1658, %v1649
        %v1660 = vpop.permute.xlu0 %1659
        %1663 = vset.pattern.permute.xlu0 0
        %1664 = vperm.xlu0 %1663, %v1650
        %v1665 = vpop.permute.xlu0 %1664
        %1668 = vset.pattern.permute.xlu0 0
        %1669 = vperm.xlu0 %1668, %v1651
        %v1670 = vpop.permute.xlu0 %1669
        %1673 = vset.pattern.permute.xlu0 0
        %1674 = vperm.xlu0 %1673, %v1652
        %v1675 = vpop.permute.xlu0 %1674
        %1678 = vset.pattern.permute.xlu0 0
        %1679 = vperm.xlu0 %1678, %v1653
        %v1680 = vpop.permute.xlu0 %1679
        %1683 = vset.pattern.permute.xlu0 0
        %1684 = vperm.xlu0 %1683, %v1654
        %v1685 = vpop.permute.xlu0 %1684
        %1688 = vset.pattern.permute.xlu0 0
        %1689 = vperm.xlu0 %1688, %v1655
        %v1690 = vpop.permute.xlu0 %1689
        %1693 = vset.pattern.permute.xlu0 0
        %1694 = vperm.xlu0 %1693, %v1656
        %v1695 = vpop.permute.xlu0 %1694
        %vm1697 = vcmask 523264
        %v1699 = vsel %vm1697, %v1641, 0
        %v1702 = vsel %vm1697, %v1642, 0
        %v1705 = vsel %vm1697, %v1643, 0
        %v1708 = vsel %vm1697, %v1644, 0
        %v1711 = vsel %vm1697, %v1645, 0
        %v1714 = vsel %vm1697, %v1646, 0
        %v1717 = vsel %vm1697, %v1647, 0
        %v1720 = vsel %vm1697, %v1648, 0
        %1722 = vmatprep.subr.mxu0 0.0
        %1723 = vmatpush1.msra.mxu0 0.0
        %1724 = vmatprep.subr.mxu0 0.0
        %1725 = vmatpush1.msra.mxu0 0.0
        %1726 = vmatprep.subr.mxu0 0.0
        %1727 = vmatpush1.msra.mxu0 0.0
        %1728 = vmatprep.subr.mxu0 0.0
        %1729 = vmatpush1.msra.mxu0 0.0
        %1730 = vmatprep.subr.mxu0 0.0
        %1731 = vmatpush1.msra.mxu0 0.0
        %1732 = vmatprep.subr.mxu0 0.0
        %1733 = vmatpush1.msra.mxu0 0.0
        %1734 = vmatprep.subr.mxu0 0.0
        %1735 = vmatpush1.msra.mxu0 0.0
        %1736 = vmatprep.subr.mxu0 0.0
        %1737 = vmatpush1.msra.mxu0 0.0
        %1738 = vmatprep.subr.mxu0 %v1624
        %1739 = vmatpush1.msra.mxu0 %v1623
        %1740 = vmatprep.subr.mxu0 %v1622
        %1741 = vmatpush1.msra.mxu0 %v1621
        %1742 = vmatprep.subr.mxu0 %v1620
        %1743 = vmatpush1.msra.mxu0 %v1619
        %1744 = vmatprep.subr.mxu0 %v1618
        %1745 = vmatpush1.msra.mxu0 %v1617
        %1746 = vmatprep.subr.mxu0 %v1616
        %1747 = vmatpush1.msra.mxu0 %v1615
        %1748 = vmatprep.subr.mxu0 %v1614
        %1749 = vmatpush1.msra.mxu0 %v1613
        %1750 = vmatprep.subr.mxu0 %v1612
        %1751 = vmatpush1.msra.mxu0 %v1611
        %1752 = vmatprep.subr.mxu0 %v1610
        %1753 = vmatpush1.msra.mxu0 %v1609
        %1754 = vmatprep.subr.mxu0 0.0
        %1755 = vmatpush2.msra.mxu0 0.0
        %1756 = vmatprep.subr.mxu0 0.0
        %1757 = vmatpush2.msra.mxu0 0.0
        %1758 = vmatprep.subr.mxu0 0.0
        %1759 = vmatpush2.msra.mxu0 0.0
        %1760 = vmatprep.subr.mxu0 0.0
        %1761 = vmatpush2.msra.mxu0 0.0
        %1762 = vmatprep.subr.mxu0 0.0
        %1763 = vmatpush2.msra.mxu0 0.0
        %1764 = vmatprep.subr.mxu0 0.0
        %1765 = vmatpush2.msra.mxu0 0.0
        %1766 = vmatprep.subr.mxu0 0.0
        %1767 = vmatpush2.msra.mxu0 0.0
        %1768 = vmatprep.subr.mxu0 0.0
        %1769 = vmatpush2.msra.mxu0 0.0
        %1770 = vmatprep.subr.mxu0 0.0
        %1771 = vmatpush2.msra.mxu0 0.0
        %1772 = vmatprep.subr.mxu0 0.0
        %1773 = vmatpush2.msra.mxu0 0.0
        %1774 = vmatprep.subr.mxu0 0.0
        %1775 = vmatpush2.msra.mxu0 0.0
        %1776 = vmatprep.subr.mxu0 0.0
        %1777 = vmatpush2.msra.mxu0 0.0
        %1778 = vmatprep.subr.mxu0 0.0
        %1779 = vmatpush2.msra.mxu0 0.0
        %1780 = vmatprep.subr.mxu0 0.0
        %1781 = vmatpush2.msra.mxu0 0.0
        %1782 = vmatprep.subr.mxu0 0.0
        %1783 = vmatpush2.msra.mxu0 0.0
        %1784 = vmatprep.subr.mxu0 0.0
        %1785 = vmatpush2.msra.mxu0 0.0
        %1786 = vmatprep.mubr.f32.mxu0 0.0
        %1787 = vmatmul.mubr.f32.gmra.mxu0 %v1699
        %v1788 = vpop.f32.mrf.mxu0
        %v1789 = vadd.f32 %v1660, %v1788
        %v1790 = vpop.f32.mrf.mxu0
        %v1791 = vadd.f32 %v1660, %v1790
        %1792 = vmatprep.mubr.f32.mxu0 0.0
        %1793 = vmatmul.mubr.f32.gmra.mxu0 %v1702
        %v1794 = vpop.f32.mrf.mxu0
        %v1795 = vadd.f32 %v1665, %v1794
        %v1796 = vpop.f32.mrf.mxu0
        %v1797 = vadd.f32 %v1665, %v1796
        %1798 = vmatprep.mubr.f32.mxu0 0.0
        %1799 = vmatmul.mubr.f32.gmra.mxu0 %v1705
        %v1800 = vpop.f32.mrf.mxu0
        %v1801 = vadd.f32 %v1670, %v1800
        %v1802 = vpop.f32.mrf.mxu0
        %v1803 = vadd.f32 %v1670, %v1802
        %1804 = vmatprep.mubr.f32.mxu0 0.0
        %1805 = vmatmul.mubr.f32.gmra.mxu0 %v1708
        %v1806 = vpop.f32.mrf.mxu0
        %v1807 = vadd.f32 %v1675, %v1806
        %v1808 = vpop.f32.mrf.mxu0
        %v1809 = vadd.f32 %v1675, %v1808
        %1810 = vmatprep.mubr.f32.mxu0 0.0
        %1811 = vmatmul.mubr.f32.gmra.mxu0 %v1711
        %v1812 = vpop.f32.mrf.mxu0
        %v1813 = vadd.f32 %v1680, %v1812
        %v1814 = vpop.f32.mrf.mxu0
        %v1815 = vadd.f32 %v1680, %v1814
        %1816 = vmatprep.mubr.f32.mxu0 0.0
        %1817 = vmatmul.mubr.f32.gmra.mxu0 %v1714
        %v1818 = vpop.f32.mrf.mxu0
        %v1819 = vadd.f32 %v1685, %v1818
        %v1820 = vpop.f32.mrf.mxu0
        %v1821 = vadd.f32 %v1685, %v1820
        %1822 = vmatprep.mubr.f32.mxu0 0.0
        %1823 = vmatmul.mubr.f32.gmra.mxu0 %v1717
        %v1824 = vpop.f32.mrf.mxu0
        %v1825 = vadd.f32 %v1690, %v1824
        %v1826 = vpop.f32.mrf.mxu0
        %v1827 = vadd.f32 %v1690, %v1826
        %1828 = vmatprep.mubr.f32.mxu0 0.0
        %1829 = vmatmul.mubr.f32.gmra.mxu0 %v1720
        %v1830 = vpop.f32.mrf.mxu0
        %v1831 = vadd.f32 %v1695, %v1830
        %v1832 = vpop.f32.mrf.mxu0
        %v1833 = vadd.f32 %v1695, %v1832
        %1834 = vdwg.mxu0
        %v1835 = vtanh.pop %v1789
        %v1836 = vtanh.pop %v1791
        %v1837 = vtanh.pop %v1795
        %v1838 = vtanh.pop %v1797
        %v1839 = vtanh.pop %v1801
        %v1840 = vtanh.pop %v1803
        %v1841 = vtanh.pop %v1807
        %v1842 = vtanh.pop %v1809
        %v1843 = vtanh.pop %v1813
        %v1844 = vtanh.pop %v1815
        %v1845 = vtanh.pop %v1819
        %v1846 = vtanh.pop %v1821
        %v1847 = vtanh.pop %v1825
        %v1848 = vtanh.pop %v1827
        %v1849 = vtanh.pop %v1831
        %v1850 = vtanh.pop %v1833
        %v1851 = vmul.f32 %v1835, %v1625
        %v1852 = vmul.f32 %v1836, %v1626
        %v1853 = vmul.f32 %v1837, %v1627
        %v1854 = vmul.f32 %v1838, %v1628
        %v1855 = vmul.f32 %v1839, %v1629
        %v1856 = vmul.f32 %v1840, %v1630
        %v1857 = vmul.f32 %v1841, %v1631
        %v1858 = vmul.f32 %v1842, %v1632
        %v1859 = vmul.f32 %v1843, %v1633
        %v1860 = vmul.f32 %v1844, %v1634
        %v1861 = vmul.f32 %v1845, %v1635
        %v1862 = vmul.f32 %v1846, %v1636
        %v1863 = vmul.f32 %v1847, %v1637
        %v1864 = vmul.f32 %v1848, %v1638
        %v1865 = vmul.f32 %v1849, %v1639
        %v1866 = vmul.f32 %v1850, %v1640
        %v1867 = vadd.f32 %v1577, %v1851
        %v1868 = vadd.f32 %v1578, %v1852
        %v1869 = vadd.f32 %v1579, %v1853
        %v1870 = vadd.f32 %v1580, %v1854
        %v1871 = vadd.f32 %v1581, %v1855
        %v1872 = vadd.f32 %v1582, %v1856
        %v1873 = vadd.f32 %v1583, %v1857
        %v1874 = vadd.f32 %v1584, %v1858
        %v1875 = vadd.f32 %v1585, %v1859
        %v1876 = vadd.f32 %v1586, %v1860
        %v1877 = vadd.f32 %v1587, %v1861
        %v1878 = vadd.f32 %v1588, %v1862
        %v1879 = vadd.f32 %v1589, %v1863
        %v1880 = vadd.f32 %v1590, %v1864
        %v1881 = vadd.f32 %v1591, %v1865
        %v1882 = vadd.f32 %v1592, %v1866
        %s1883 = scalar_lea.vmem %s6, 64
        %v1884 = vld [vmem:[%s1883] sm:$0xff]
        %v1885 = vld [vmem:[%s1883 + $0x8] sm:$0xff]
        %v1886 = vld [vmem:[%s1883 + $0x10] sm:$0xff]
        %v1887 = vld [vmem:[%s1883 + $0x18] sm:$0xff]
        %v1888 = vld [vmem:[%s1883 + $0x20] sm:$0xff]
        %v1889 = vld [vmem:[%s1883 + $0x28] sm:$0xff]
        %v1890 = vld [vmem:[%s1883 + $0x30] sm:$0xff]
        %v1891 = vld [vmem:[%s1883 + $0x38] sm:$0xff]
        %s1892 = scalar_lea.vmem %s7, 64
        %v1893 = vld [vmem:[%s1892] sm:$0xff]
        %v1894 = vld [vmem:[%s1892 + $0x8] sm:$0xff]
        %v1895 = vld [vmem:[%s1892 + $0x10] sm:$0xff]
        %v1896 = vld [vmem:[%s1892 + $0x18] sm:$0xff]
        %v1897 = vld [vmem:[%s1892 + $0x20] sm:$0xff]
        %v1898 = vld [vmem:[%s1892 + $0x28] sm:$0xff]
        %v1899 = vld [vmem:[%s1892 + $0x30] sm:$0xff]
        %v1900 = vld [vmem:[%s1892 + $0x38] sm:$0xff]
        %1902 = vset.pattern.permute.xlu0 0
        %1903 = vperm.xlu0 %1902, %v1893
        %v1904 = vpop.permute.xlu0 %1903
        %1907 = vset.pattern.permute.xlu0 0
        %1908 = vperm.xlu0 %1907, %v1894
        %v1909 = vpop.permute.xlu0 %1908
        %1912 = vset.pattern.permute.xlu0 0
        %1913 = vperm.xlu0 %1912, %v1895
        %v1914 = vpop.permute.xlu0 %1913
        %1917 = vset.pattern.permute.xlu0 0
        %1918 = vperm.xlu0 %1917, %v1896
        %v1919 = vpop.permute.xlu0 %1918
        %1922 = vset.pattern.permute.xlu0 0
        %1923 = vperm.xlu0 %1922, %v1897
        %v1924 = vpop.permute.xlu0 %1923
        %1927 = vset.pattern.permute.xlu0 0
        %1928 = vperm.xlu0 %1927, %v1898
        %v1929 = vpop.permute.xlu0 %1928
        %1932 = vset.pattern.permute.xlu0 0
        %1933 = vperm.xlu0 %1932, %v1899
        %v1934 = vpop.permute.xlu0 %1933
        %1937 = vset.pattern.permute.xlu0 0
        %1938 = vperm.xlu0 %1937, %v1900
        %v1939 = vpop.permute.xlu0 %1938
        %v1942 = vsel %vm1697, %v1884, 0
        %v1945 = vsel %vm1697, %v1885, 0
        %v1948 = vsel %vm1697, %v1886, 0
        %v1951 = vsel %vm1697, %v1887, 0
        %v1954 = vsel %vm1697, %v1888, 0
        %v1957 = vsel %vm1697, %v1889, 0
        %v1960 = vsel %vm1697, %v1890, 0
        %v1963 = vsel %vm1697, %v1891, 0
        %1965 = vmatprep.subr.mxu0 0.0
        %1966 = vmatpush1.msra.mxu0 0.0
        %1967 = vmatprep.subr.mxu0 0.0
        %1968 = vmatpush1.msra.mxu0 0.0
        %1969 = vmatprep.subr.mxu0 0.0
        %1970 = vmatpush1.msra.mxu0 0.0
        %1971 = vmatprep.subr.mxu0 0.0
        %1972 = vmatpush1.msra.mxu0 0.0
        %1973 = vmatprep.subr.mxu0 0.0
        %1974 = vmatpush1.msra.mxu0 0.0
        %1975 = vmatprep.subr.mxu0 0.0
        %1976 = vmatpush1.msra.mxu0 0.0
        %1977 = vmatprep.subr.mxu0 0.0
        %1978 = vmatpush1.msra.mxu0 0.0
        %1979 = vmatprep.subr.mxu0 0.0
        %1980 = vmatpush1.msra.mxu0 0.0
        %1981 = vmatprep.subr.mxu0 %v1882
        %1982 = vmatpush1.msra.mxu0 %v1881
        %1983 = vmatprep.subr.mxu0 %v1880
        %1984 = vmatpush1.msra.mxu0 %v1879
        %1985 = vmatprep.subr.mxu0 %v1878
        %1986 = vmatpush1.msra.mxu0 %v1877
        %1987 = vmatprep.subr.mxu0 %v1876
        %1988 = vmatpush1.msra.mxu0 %v1875
        %1989 = vmatprep.subr.mxu0 %v1874
        %1990 = vmatpush1.msra.mxu0 %v1873
        %1991 = vmatprep.subr.mxu0 %v1872
        %1992 = vmatpush1.msra.mxu0 %v1871
        %1993 = vmatprep.subr.mxu0 %v1870
        %1994 = vmatpush1.msra.mxu0 %v1869
        %1995 = vmatprep.subr.mxu0 %v1868
        %1996 = vmatpush1.msra.mxu0 %v1867
        %1997 = vmatprep.subr.mxu0 0.0
        %1998 = vmatpush2.msra.mxu0 0.0
        %1999 = vmatprep.subr.mxu0 0.0
        %2000 = vmatpush2.msra.mxu0 0.0
        %2001 = vmatprep.subr.mxu0 0.0
        %2002 = vmatpush2.msra.mxu0 0.0
        %2003 = vmatprep.subr.mxu0 0.0
        %2004 = vmatpush2.msra.mxu0 0.0
        %2005 = vmatprep.subr.mxu0 0.0
        %2006 = vmatpush2.msra.mxu0 0.0
        %2007 = vmatprep.subr.mxu0 0.0
        %2008 = vmatpush2.msra.mxu0 0.0
        %2009 = vmatprep.subr.mxu0 0.0
        %2010 = vmatpush2.msra.mxu0 0.0
        %2011 = vmatprep.subr.mxu0 0.0
        %2012 = vmatpush2.msra.mxu0 0.0
        %2013 = vmatprep.subr.mxu0 0.0
        %2014 = vmatpush2.msra.mxu0 0.0
        %2015 = vmatprep.subr.mxu0 0.0
        %2016 = vmatpush2.msra.mxu0 0.0
        %2017 = vmatprep.subr.mxu0 0.0
        %2018 = vmatpush2.msra.mxu0 0.0
        %2019 = vmatprep.subr.mxu0 0.0
        %2020 = vmatpush2.msra.mxu0 0.0
        %2021 = vmatprep.subr.mxu0 0.0
        %2022 = vmatpush2.msra.mxu0 0.0
        %2023 = vmatprep.subr.mxu0 0.0
        %2024 = vmatpush2.msra.mxu0 0.0
        %2025 = vmatprep.subr.mxu0 0.0
        %2026 = vmatpush2.msra.mxu0 0.0
        %2027 = vmatprep.subr.mxu0 0.0
        %2028 = vmatpush2.msra.mxu0 0.0
        %2029 = vmatprep.mubr.f32.mxu0 0.0
        %2030 = vmatmul.mubr.f32.gmra.mxu0 %v1942
        %v2031 = vpop.f32.mrf.mxu0
        %v2032 = vadd.f32 %v1904, %v2031
        %v2033 = vpop.f32.mrf.mxu0
        %v2034 = vadd.f32 %v1904, %v2033
        %2035 = vmatprep.mubr.f32.mxu0 0.0
        %2036 = vmatmul.mubr.f32.gmra.mxu0 %v1945
        %v2037 = vpop.f32.mrf.mxu0
        %v2038 = vadd.f32 %v1909, %v2037
        %v2039 = vpop.f32.mrf.mxu0
        %v2040 = vadd.f32 %v1909, %v2039
        %2041 = vmatprep.mubr.f32.mxu0 0.0
        %2042 = vmatmul.mubr.f32.gmra.mxu0 %v1948
        %v2043 = vpop.f32.mrf.mxu0
        %v2044 = vadd.f32 %v1914, %v2043
        %v2045 = vpop.f32.mrf.mxu0
        %v2046 = vadd.f32 %v1914, %v2045
        %2047 = vmatprep.mubr.f32.mxu0 0.0
        %2048 = vmatmul.mubr.f32.gmra.mxu0 %v1951
        %v2049 = vpop.f32.mrf.mxu0
        %v2050 = vadd.f32 %v1919, %v2049
        %v2051 = vpop.f32.mrf.mxu0
        %v2052 = vadd.f32 %v1919, %v2051
        %2053 = vmatprep.mubr.f32.mxu0 0.0
        %2054 = vmatmul.mubr.f32.gmra.mxu0 %v1954
        %v2055 = vpop.f32.mrf.mxu0
        %v2056 = vadd.f32 %v1924, %v2055
        %v2057 = vpop.f32.mrf.mxu0
        %v2058 = vadd.f32 %v1924, %v2057
        %2059 = vmatprep.mubr.f32.mxu0 0.0
        %2060 = vmatmul.mubr.f32.gmra.mxu0 %v1957
        %v2061 = vpop.f32.mrf.mxu0
        %v2062 = vadd.f32 %v1929, %v2061
        %v2063 = vpop.f32.mrf.mxu0
        %v2064 = vadd.f32 %v1929, %v2063
        %2065 = vmatprep.mubr.f32.mxu0 0.0
        %2066 = vmatmul.mubr.f32.gmra.mxu0 %v1960
        %v2067 = vpop.f32.mrf.mxu0
        %v2068 = vadd.f32 %v1934, %v2067
        %v2069 = vpop.f32.mrf.mxu0
        %v2070 = vadd.f32 %v1934, %v2069
        %2071 = vmatprep.mubr.f32.mxu0 0.0
        %2072 = vmatmul.mubr.f32.gmra.mxu0 %v1963
        %v2073 = vpop.f32.mrf.mxu0
        %v2074 = vadd.f32 %v1939, %v2073
        %v2075 = vpop.f32.mrf.mxu0
        %v2076 = vadd.f32 %v1939, %v2075
        %2077 = vdwg.mxu0
        %v2078 = vtanh.pop %v2032
        %v2079 = vtanh.pop %v2034
        %v2080 = vtanh.pop %v2038
        %v2081 = vtanh.pop %v2040
        %v2082 = vtanh.pop %v2044
        %v2083 = vtanh.pop %v2046
        %v2084 = vtanh.pop %v2050
        %v2085 = vtanh.pop %v2052
        %v2086 = vtanh.pop %v2056
        %v2087 = vtanh.pop %v2058
        %v2088 = vtanh.pop %v2062
        %v2089 = vtanh.pop %v2064
        %v2090 = vtanh.pop %v2068
        %v2091 = vtanh.pop %v2070
        %v2092 = vtanh.pop %v2074
        %v2093 = vtanh.pop %v2076
        %v2094 = vmul.f32 %v2078, %v1625
        %v2095 = vmul.f32 %v2079, %v1626
        %v2096 = vmul.f32 %v2080, %v1627
        %v2097 = vmul.f32 %v2081, %v1628
        %v2098 = vmul.f32 %v2082, %v1629
        %v2099 = vmul.f32 %v2083, %v1630
        %v2100 = vmul.f32 %v2084, %v1631
        %v2101 = vmul.f32 %v2085, %v1632
        %v2102 = vmul.f32 %v2086, %v1633
        %v2103 = vmul.f32 %v2087, %v1634
        %v2104 = vmul.f32 %v2088, %v1635
        %v2105 = vmul.f32 %v2089, %v1636
        %v2106 = vmul.f32 %v2090, %v1637
        %v2107 = vmul.f32 %v2091, %v1638
        %v2108 = vmul.f32 %v2092, %v1639
        %v2109 = vmul.f32 %v2093, %v1640
        %v2110 = vadd.f32 %v1577, %v2094
        %v2111 = vadd.f32 %v1578, %v2095
        %v2112 = vadd.f32 %v1579, %v2096
        %v2113 = vadd.f32 %v1580, %v2097
        %v2114 = vadd.f32 %v1581, %v2098
        %v2115 = vadd.f32 %v1582, %v2099
        %v2116 = vadd.f32 %v1583, %v2100
        %v2117 = vadd.f32 %v1584, %v2101
        %v2118 = vadd.f32 %v1585, %v2102
        %v2119 = vadd.f32 %v1586, %v2103
        %v2120 = vadd.f32 %v1587, %v2104
        %v2121 = vadd.f32 %v1588, %v2105
        %v2122 = vadd.f32 %v1589, %v2106
        %v2123 = vadd.f32 %v1590, %v2107
        %v2124 = vadd.f32 %v1591, %v2108
        %v2125 = vadd.f32 %v1592, %v2109
        %s2126 = scalar_lea.vmem %s6, 128
        %v2127 = vld [vmem:[%s2126] sm:$0xff]
        %v2128 = vld [vmem:[%s2126 + $0x8] sm:$0xff]
        %v2129 = vld [vmem:[%s2126 + $0x10] sm:$0xff]
        %v2130 = vld [vmem:[%s2126 + $0x18] sm:$0xff]
        %v2131 = vld [vmem:[%s2126 + $0x20] sm:$0xff]
        %v2132 = vld [vmem:[%s2126 + $0x28] sm:$0xff]
        %v2133 = vld [vmem:[%s2126 + $0x30] sm:$0xff]
        %v2134 = vld [vmem:[%s2126 + $0x38] sm:$0xff]
        %s2135 = scalar_lea.vmem %s7, 128
        %v2136 = vld [vmem:[%s2135] sm:$0xff]
        %v2137 = vld [vmem:[%s2135 + $0x8] sm:$0xff]
        %v2138 = vld [vmem:[%s2135 + $0x10] sm:$0xff]
        %v2139 = vld [vmem:[%s2135 + $0x18] sm:$0xff]
        %v2140 = vld [vmem:[%s2135 + $0x20] sm:$0xff]
        %v2141 = vld [vmem:[%s2135 + $0x28] sm:$0xff]
        %v2142 = vld [vmem:[%s2135 + $0x30] sm:$0xff]
        %v2143 = vld [vmem:[%s2135 + $0x38] sm:$0xff]
        %2145 = vset.pattern.permute.xlu0 0
        %2146 = vperm.xlu0 %2145, %v2136
        %v2147 = vpop.permute.xlu0 %2146
        %2150 = vset.pattern.permute.xlu0 0
        %2151 = vperm.xlu0 %2150, %v2137
        %v2152 = vpop.permute.xlu0 %2151
        %2155 = vset.pattern.permute.xlu0 0
        %2156 = vperm.xlu0 %2155, %v2138
        %v2157 = vpop.permute.xlu0 %2156
        %2160 = vset.pattern.permute.xlu0 0
        %2161 = vperm.xlu0 %2160, %v2139
        %v2162 = vpop.permute.xlu0 %2161
        %2165 = vset.pattern.permute.xlu0 0
        %2166 = vperm.xlu0 %2165, %v2140
        %v2167 = vpop.permute.xlu0 %2166
        %2170 = vset.pattern.permute.xlu0 0
        %2171 = vperm.xlu0 %2170, %v2141
        %v2172 = vpop.permute.xlu0 %2171
        %2175 = vset.pattern.permute.xlu0 0
        %2176 = vperm.xlu0 %2175, %v2142
        %v2177 = vpop.permute.xlu0 %2176
        %2180 = vset.pattern.permute.xlu0 0
        %2181 = vperm.xlu0 %2180, %v2143
        %v2182 = vpop.permute.xlu0 %2181
        %v2185 = vsel %vm1697, %v2127, 0
        %v2188 = vsel %vm1697, %v2128, 0
        %v2191 = vsel %vm1697, %v2129, 0
        %v2194 = vsel %vm1697, %v2130, 0
        %v2197 = vsel %vm1697, %v2131, 0
        %v2200 = vsel %vm1697, %v2132, 0
        %v2203 = vsel %vm1697, %v2133, 0
        %v2206 = vsel %vm1697, %v2134, 0
        %2208 = vmatprep.subr.mxu0 0.0
        %2209 = vmatpush1.msra.mxu0 0.0
        %2210 = vmatprep.subr.mxu0 0.0
        %2211 = vmatpush1.msra.mxu0 0.0
        %2212 = vmatprep.subr.mxu0 0.0
        %2213 = vmatpush1.msra.mxu0 0.0
        %2214 = vmatprep.subr.mxu0 0.0
        %2215 = vmatpush1.msra.mxu0 0.0
        %2216 = vmatprep.subr.mxu0 0.0
        %2217 = vmatpush1.msra.mxu0 0.0
        %2218 = vmatprep.subr.mxu0 0.0
        %2219 = vmatpush1.msra.mxu0 0.0
        %2220 = vmatprep.subr.mxu0 0.0
        %2221 = vmatpush1.msra.mxu0 0.0
        %2222 = vmatprep.subr.mxu0 0.0
        %2223 = vmatpush1.msra.mxu0 0.0
        %2224 = vmatprep.subr.mxu0 %v2125
        %2225 = vmatpush1.msra.mxu0 %v2124
        %2226 = vmatprep.subr.mxu0 %v2123
        %2227 = vmatpush1.msra.mxu0 %v2122
        %2228 = vmatprep.subr.mxu0 %v2121
        %2229 = vmatpush1.msra.mxu0 %v2120
        %2230 = vmatprep.subr.mxu0 %v2119
        %2231 = vmatpush1.msra.mxu0 %v2118
        %2232 = vmatprep.subr.mxu0 %v2117
        %2233 = vmatpush1.msra.mxu0 %v2116
        %2234 = vmatprep.subr.mxu0 %v2115
        %2235 = vmatpush1.msra.mxu0 %v2114
        %2236 = vmatprep.subr.mxu0 %v2113
        %2237 = vmatpush1.msra.mxu0 %v2112
        %2238 = vmatprep.subr.mxu0 %v2111
        %2239 = vmatpush1.msra.mxu0 %v2110
        %2240 = vmatprep.subr.mxu0 0.0
        %2241 = vmatpush2.msra.mxu0 0.0
        %2242 = vmatprep.subr.mxu0 0.0
        %2243 = vmatpush2.msra.mxu0 0.0
        %2244 = vmatprep.subr.mxu0 0.0
        %2245 = vmatpush2.msra.mxu0 0.0
        %2246 = vmatprep.subr.mxu0 0.0
        %2247 = vmatpush2.msra.mxu0 0.0
        %2248 = vmatprep.subr.mxu0 0.0
        %2249 = vmatpush2.msra.mxu0 0.0
        %2250 = vmatprep.subr.mxu0 0.0
        %2251 = vmatpush2.msra.mxu0 0.0
        %2252 = vmatprep.subr.mxu0 0.0
        %2253 = vmatpush2.msra.mxu0 0.0
        %2254 = vmatprep.subr.mxu0 0.0
        %2255 = vmatpush2.msra.mxu0 0.0
        %2256 = vmatprep.subr.mxu0 0.0
        %2257 = vmatpush2.msra.mxu0 0.0
        %2258 = vmatprep.subr.mxu0 0.0
        %2259 = vmatpush2.msra.mxu0 0.0
        %2260 = vmatprep.subr.mxu0 0.0
        %2261 = vmatpush2.msra.mxu0 0.0
        %2262 = vmatprep.subr.mxu0 0.0
        %2263 = vmatpush2.msra.mxu0 0.0
        %2264 = vmatprep.subr.mxu0 0.0
        %2265 = vmatpush2.msra.mxu0 0.0
        %2266 = vmatprep.subr.mxu0 0.0
        %2267 = vmatpush2.msra.mxu0 0.0
        %2268 = vmatprep.subr.mxu0 0.0
        %2269 = vmatpush2.msra.mxu0 0.0
        %2270 = vmatprep.subr.mxu0 0.0
        %2271 = vmatpush2.msra.mxu0 0.0
        %2272 = vmatprep.mubr.f32.mxu0 0.0
        %2273 = vmatmul.mubr.f32.gmra.mxu0 %v2185
        %v2274 = vpop.f32.mrf.mxu0
        %v2275 = vadd.f32 %v2147, %v2274
        %v2276 = vpop.f32.mrf.mxu0
        %v2277 = vadd.f32 %v2147, %v2276
        %2278 = vmatprep.mubr.f32.mxu0 0.0
        %2279 = vmatmul.mubr.f32.gmra.mxu0 %v2188
        %v2280 = vpop.f32.mrf.mxu0
        %v2281 = vadd.f32 %v2152, %v2280
        %v2282 = vpop.f32.mrf.mxu0
        %v2283 = vadd.f32 %v2152, %v2282
        %2284 = vmatprep.mubr.f32.mxu0 0.0
        %2285 = vmatmul.mubr.f32.gmra.mxu0 %v2191
        %v2286 = vpop.f32.mrf.mxu0
        %v2287 = vadd.f32 %v2157, %v2286
        %v2288 = vpop.f32.mrf.mxu0
        %v2289 = vadd.f32 %v2157, %v2288
        %2290 = vmatprep.mubr.f32.mxu0 0.0
        %2291 = vmatmul.mubr.f32.gmra.mxu0 %v2194
        %v2292 = vpop.f32.mrf.mxu0
        %v2293 = vadd.f32 %v2162, %v2292
        %v2294 = vpop.f32.mrf.mxu0
        %v2295 = vadd.f32 %v2162, %v2294
        %2296 = vmatprep.mubr.f32.mxu0 0.0
        %2297 = vmatmul.mubr.f32.gmra.mxu0 %v2197
        %v2298 = vpop.f32.mrf.mxu0
        %v2299 = vadd.f32 %v2167, %v2298
        %v2300 = vpop.f32.mrf.mxu0
        %v2301 = vadd.f32 %v2167, %v2300
        %2302 = vmatprep.mubr.f32.mxu0 0.0
        %2303 = vmatmul.mubr.f32.gmra.mxu0 %v2200
        %v2304 = vpop.f32.mrf.mxu0
        %v2305 = vadd.f32 %v2172, %v2304
        %v2306 = vpop.f32.mrf.mxu0
        %v2307 = vadd.f32 %v2172, %v2306
        %2308 = vmatprep.mubr.f32.mxu0 0.0
        %2309 = vmatmul.mubr.f32.gmra.mxu0 %v2203
        %v2310 = vpop.f32.mrf.mxu0
        %v2311 = vadd.f32 %v2177, %v2310
        %v2312 = vpop.f32.mrf.mxu0
        %v2313 = vadd.f32 %v2177, %v2312
        %2314 = vmatprep.mubr.f32.mxu0 0.0
        %2315 = vmatmul.mubr.f32.gmra.mxu0 %v2206
        %v2316 = vpop.f32.mrf.mxu0
        %v2317 = vadd.f32 %v2182, %v2316
        %v2318 = vpop.f32.mrf.mxu0
        %v2319 = vadd.f32 %v2182, %v2318
        %2320 = vdwg.mxu0
        %v2321 = vtanh.pop %v2275
        %v2322 = vtanh.pop %v2277
        %v2323 = vtanh.pop %v2281
        %v2324 = vtanh.pop %v2283
        %v2325 = vtanh.pop %v2287
        %v2326 = vtanh.pop %v2289
        %v2327 = vtanh.pop %v2293
        %v2328 = vtanh.pop %v2295
        %v2329 = vtanh.pop %v2299
        %v2330 = vtanh.pop %v2301
        %v2331 = vtanh.pop %v2305
        %v2332 = vtanh.pop %v2307
        %v2333 = vtanh.pop %v2311
        %v2334 = vtanh.pop %v2313
        %v2335 = vtanh.pop %v2317
        %v2336 = vtanh.pop %v2319
        %v2337 = vmul.f32 %v2321, %v1625
        %v2338 = vmul.f32 %v2322, %v1626
        %v2339 = vmul.f32 %v2323, %v1627
        %v2340 = vmul.f32 %v2324, %v1628
        %v2341 = vmul.f32 %v2325, %v1629
        %v2342 = vmul.f32 %v2326, %v1630
        %v2343 = vmul.f32 %v2327, %v1631
        %v2344 = vmul.f32 %v2328, %v1632
        %v2345 = vmul.f32 %v2329, %v1633
        %v2346 = vmul.f32 %v2330, %v1634
        %v2347 = vmul.f32 %v2331, %v1635
        %v2348 = vmul.f32 %v2332, %v1636
        %v2349 = vmul.f32 %v2333, %v1637
        %v2350 = vmul.f32 %v2334, %v1638
        %v2351 = vmul.f32 %v2335, %v1639
        %v2352 = vmul.f32 %v2336, %v1640
        %v2353 = vadd.f32 %v1577, %v2337
        %v2354 = vadd.f32 %v1578, %v2338
        %v2355 = vadd.f32 %v1579, %v2339
        %v2356 = vadd.f32 %v1580, %v2340
        %v2357 = vadd.f32 %v1581, %v2341
        %v2358 = vadd.f32 %v1582, %v2342
        %v2359 = vadd.f32 %v1583, %v2343
        %v2360 = vadd.f32 %v1584, %v2344
        %v2361 = vadd.f32 %v1585, %v2345
        %v2362 = vadd.f32 %v1586, %v2346
        %v2363 = vadd.f32 %v1587, %v2347
        %v2364 = vadd.f32 %v1588, %v2348
        %v2365 = vadd.f32 %v1589, %v2349
        %v2366 = vadd.f32 %v1590, %v2350
        %v2367 = vadd.f32 %v1591, %v2351
        %v2368 = vadd.f32 %v1592, %v2352
        %s2369 = scalar_lea.vmem %s6, 192
        %v2370 = vld [vmem:[%s2369] sm:$0xff]
        %v2371 = vld [vmem:[%s2369 + $0x8] sm:$0xff]
        %v2372 = vld [vmem:[%s2369 + $0x10] sm:$0xff]
        %v2373 = vld [vmem:[%s2369 + $0x18] sm:$0xff]
        %v2374 = vld [vmem:[%s2369 + $0x20] sm:$0xff]
        %v2375 = vld [vmem:[%s2369 + $0x28] sm:$0xff]
        %v2376 = vld [vmem:[%s2369 + $0x30] sm:$0xff]
        %v2377 = vld [vmem:[%s2369 + $0x38] sm:$0xff]
        %s2378 = scalar_lea.vmem %s7, 192
        %v2379 = vld [vmem:[%s2378] sm:$0xff]
        %v2380 = vld [vmem:[%s2378 + $0x8] sm:$0xff]
        %v2381 = vld [vmem:[%s2378 + $0x10] sm:$0xff]
        %v2382 = vld [vmem:[%s2378 + $0x18] sm:$0xff]
        %v2383 = vld [vmem:[%s2378 + $0x20] sm:$0xff]
        %v2384 = vld [vmem:[%s2378 + $0x28] sm:$0xff]
        %v2385 = vld [vmem:[%s2378 + $0x30] sm:$0xff]
        %v2386 = vld [vmem:[%s2378 + $0x38] sm:$0xff]
        %2388 = vset.pattern.permute.xlu0 0
        %2389 = vperm.xlu0 %2388, %v2379
        %v2390 = vpop.permute.xlu0 %2389
        %2393 = vset.pattern.permute.xlu0 0
        %2394 = vperm.xlu0 %2393, %v2380
        %v2395 = vpop.permute.xlu0 %2394
        %2398 = vset.pattern.permute.xlu0 0
        %2399 = vperm.xlu0 %2398, %v2381
        %v2400 = vpop.permute.xlu0 %2399
        %2403 = vset.pattern.permute.xlu0 0
        %2404 = vperm.xlu0 %2403, %v2382
        %v2405 = vpop.permute.xlu0 %2404
        %2408 = vset.pattern.permute.xlu0 0
        %2409 = vperm.xlu0 %2408, %v2383
        %v2410 = vpop.permute.xlu0 %2409
        %2413 = vset.pattern.permute.xlu0 0
        %2414 = vperm.xlu0 %2413, %v2384
        %v2415 = vpop.permute.xlu0 %2414
        %2418 = vset.pattern.permute.xlu0 0
        %2419 = vperm.xlu0 %2418, %v2385
        %v2420 = vpop.permute.xlu0 %2419
        %2423 = vset.pattern.permute.xlu0 0
        %2424 = vperm.xlu0 %2423, %v2386
        %v2425 = vpop.permute.xlu0 %2424
        %v2428 = vsel %vm1697, %v2370, 0
        %v2431 = vsel %vm1697, %v2371, 0
        %v2434 = vsel %vm1697, %v2372, 0
        %v2437 = vsel %vm1697, %v2373, 0
        %v2440 = vsel %vm1697, %v2374, 0
        %v2443 = vsel %vm1697, %v2375, 0
        %v2446 = vsel %vm1697, %v2376, 0
        %v2449 = vsel %vm1697, %v2377, 0
        %2451 = vmatprep.subr.mxu0 0.0
        %2452 = vmatpush1.msra.mxu0 0.0
        %2453 = vmatprep.subr.mxu0 0.0
        %2454 = vmatpush1.msra.mxu0 0.0
        %2455 = vmatprep.subr.mxu0 0.0
        %2456 = vmatpush1.msra.mxu0 0.0
        %2457 = vmatprep.subr.mxu0 0.0
        %2458 = vmatpush1.msra.mxu0 0.0
        %2459 = vmatprep.subr.mxu0 0.0
        %2460 = vmatpush1.msra.mxu0 0.0
        %2461 = vmatprep.subr.mxu0 0.0
        %2462 = vmatpush1.msra.mxu0 0.0
        %2463 = vmatprep.subr.mxu0 0.0
        %2464 = vmatpush1.msra.mxu0 0.0
        %2465 = vmatprep.subr.mxu0 0.0
        %2466 = vmatpush1.msra.mxu0 0.0
        %2467 = vmatprep.subr.mxu0 %v2368
        %2468 = vmatpush1.msra.mxu0 %v2367
        %2469 = vmatprep.subr.mxu0 %v2366
        %2470 = vmatpush1.msra.mxu0 %v2365
        %2471 = vmatprep.subr.mxu0 %v2364
        %2472 = vmatpush1.msra.mxu0 %v2363
        %2473 = vmatprep.subr.mxu0 %v2362
        %2474 = vmatpush1.msra.mxu0 %v2361
        %2475 = vmatprep.subr.mxu0 %v2360
        %2476 = vmatpush1.msra.mxu0 %v2359
        %2477 = vmatprep.subr.mxu0 %v2358
        %2478 = vmatpush1.msra.mxu0 %v2357
        %2479 = vmatprep.subr.mxu0 %v2356
        %2480 = vmatpush1.msra.mxu0 %v2355
        %2481 = vmatprep.subr.mxu0 %v2354
        %2482 = vmatpush1.msra.mxu0 %v2353
        %2483 = vmatprep.subr.mxu0 0.0
        %2484 = vmatpush2.msra.mxu0 0.0
        %2485 = vmatprep.subr.mxu0 0.0
        %2486 = vmatpush2.msra.mxu0 0.0
        %2487 = vmatprep.subr.mxu0 0.0
        %2488 = vmatpush2.msra.mxu0 0.0
        %2489 = vmatprep.subr.mxu0 0.0
        %2490 = vmatpush2.msra.mxu0 0.0
        %2491 = vmatprep.subr.mxu0 0.0
        %2492 = vmatpush2.msra.mxu0 0.0
        %2493 = vmatprep.subr.mxu0 0.0
        %2494 = vmatpush2.msra.mxu0 0.0
        %2495 = vmatprep.subr.mxu0 0.0
        %2496 = vmatpush2.msra.mxu0 0.0
        %2497 = vmatprep.subr.mxu0 0.0
        %2498 = vmatpush2.msra.mxu0 0.0
        %2499 = vmatprep.subr.mxu0 0.0
        %2500 = vmatpush2.msra.mxu0 0.0
        %2501 = vmatprep.subr.mxu0 0.0
        %2502 = vmatpush2.msra.mxu0 0.0
        %2503 = vmatprep.subr.mxu0 0.0
        %2504 = vmatpush2.msra.mxu0 0.0
        %2505 = vmatprep.subr.mxu0 0.0
        %2506 = vmatpush2.msra.mxu0 0.0
        %2507 = vmatprep.subr.mxu0 0.0
        %2508 = vmatpush2.msra.mxu0 0.0
        %2509 = vmatprep.subr.mxu0 0.0
        %2510 = vmatpush2.msra.mxu0 0.0
        %2511 = vmatprep.subr.mxu0 0.0
        %2512 = vmatpush2.msra.mxu0 0.0
        %2513 = vmatprep.subr.mxu0 0.0
        %2514 = vmatpush2.msra.mxu0 0.0
        %2515 = vmatprep.mubr.f32.mxu0 0.0
        %2516 = vmatmul.mubr.f32.gmra.mxu0 %v2428
        %v2517 = vpop.f32.mrf.mxu0
        %v2518 = vadd.f32 %v2390, %v2517
        %v2519 = vpop.f32.mrf.mxu0
        %v2520 = vadd.f32 %v2390, %v2519
        %2521 = vmatprep.mubr.f32.mxu0 0.0
        %2522 = vmatmul.mubr.f32.gmra.mxu0 %v2431
        %v2523 = vpop.f32.mrf.mxu0
        %v2524 = vadd.f32 %v2395, %v2523
        %v2525 = vpop.f32.mrf.mxu0
        %v2526 = vadd.f32 %v2395, %v2525
        %2527 = vmatprep.mubr.f32.mxu0 0.0
        %2528 = vmatmul.mubr.f32.gmra.mxu0 %v2434
        %v2529 = vpop.f32.mrf.mxu0
        %v2530 = vadd.f32 %v2400, %v2529
        %v2531 = vpop.f32.mrf.mxu0
        %v2532 = vadd.f32 %v2400, %v2531
        %2533 = vmatprep.mubr.f32.mxu0 0.0
        %2534 = vmatmul.mubr.f32.gmra.mxu0 %v2437
        %v2535 = vpop.f32.mrf.mxu0
        %v2536 = vadd.f32 %v2405, %v2535
        %v2537 = vpop.f32.mrf.mxu0
        %v2538 = vadd.f32 %v2405, %v2537
        %2539 = vmatprep.mubr.f32.mxu0 0.0
        %2540 = vmatmul.mubr.f32.gmra.mxu0 %v2440
        %v2541 = vpop.f32.mrf.mxu0
        %v2542 = vadd.f32 %v2410, %v2541
        %v2543 = vpop.f32.mrf.mxu0
        %v2544 = vadd.f32 %v2410, %v2543
        %2545 = vmatprep.mubr.f32.mxu0 0.0
        %2546 = vmatmul.mubr.f32.gmra.mxu0 %v2443
        %v2547 = vpop.f32.mrf.mxu0
        %v2548 = vadd.f32 %v2415, %v2547
        %v2549 = vpop.f32.mrf.mxu0
        %v2550 = vadd.f32 %v2415, %v2549
        %2551 = vmatprep.mubr.f32.mxu0 0.0
        %2552 = vmatmul.mubr.f32.gmra.mxu0 %v2446
        %v2553 = vpop.f32.mrf.mxu0
        %v2554 = vadd.f32 %v2420, %v2553
        %v2555 = vpop.f32.mrf.mxu0
        %v2556 = vadd.f32 %v2420, %v2555
        %2557 = vmatprep.mubr.f32.mxu0 0.0
        %2558 = vmatmul.mubr.f32.gmra.mxu0 %v2449
        %v2559 = vpop.f32.mrf.mxu0
        %v2560 = vadd.f32 %v2425, %v2559
        %v2561 = vpop.f32.mrf.mxu0
        %v2562 = vadd.f32 %v2425, %v2561
        %2563 = vdwg.mxu0
        %v2564 = vtanh.pop %v2518
        %v2565 = vtanh.pop %v2520
        %v2566 = vtanh.pop %v2524
        %v2567 = vtanh.pop %v2526
        %v2568 = vtanh.pop %v2530
        %v2569 = vtanh.pop %v2532
        %v2570 = vtanh.pop %v2536
        %v2571 = vtanh.pop %v2538
        %v2572 = vtanh.pop %v2542
        %v2573 = vtanh.pop %v2544
        %v2574 = vtanh.pop %v2548
        %v2575 = vtanh.pop %v2550
        %v2576 = vtanh.pop %v2554
        %v2577 = vtanh.pop %v2556
        %v2578 = vtanh.pop %v2560
        %v2579 = vtanh.pop %v2562
        %v2580 = vmul.f32 %v2564, %v1625
        %v2581 = vmul.f32 %v2565, %v1626
        %v2582 = vmul.f32 %v2566, %v1627
        %v2583 = vmul.f32 %v2567, %v1628
        %v2584 = vmul.f32 %v2568, %v1629
        %v2585 = vmul.f32 %v2569, %v1630
        %v2586 = vmul.f32 %v2570, %v1631
        %v2587 = vmul.f32 %v2571, %v1632
        %v2588 = vmul.f32 %v2572, %v1633
        %v2589 = vmul.f32 %v2573, %v1634
        %v2590 = vmul.f32 %v2574, %v1635
        %v2591 = vmul.f32 %v2575, %v1636
        %v2592 = vmul.f32 %v2576, %v1637
        %v2593 = vmul.f32 %v2577, %v1638
        %v2594 = vmul.f32 %v2578, %v1639
        %v2595 = vmul.f32 %v2579, %v1640
        %v2596 = vadd.f32 %v1577, %v2580
        %v2597 = vadd.f32 %v1578, %v2581
        %v2598 = vadd.f32 %v1579, %v2582
        %v2599 = vadd.f32 %v1580, %v2583
        %v2600 = vadd.f32 %v1581, %v2584
        %v2601 = vadd.f32 %v1582, %v2585
        %v2602 = vadd.f32 %v1583, %v2586
        %v2603 = vadd.f32 %v1584, %v2587
        %v2604 = vadd.f32 %v1585, %v2588
        %v2605 = vadd.f32 %v1586, %v2589
        %v2606 = vadd.f32 %v1587, %v2590
        %v2607 = vadd.f32 %v1588, %v2591
        %v2608 = vadd.f32 %v1589, %v2592
        %v2609 = vadd.f32 %v1590, %v2593
        %v2610 = vadd.f32 %v1591, %v2594
        %v2611 = vadd.f32 %v1592, %v2595
        %v2612 = vld [vmem:[%s8] sm:$0xff]
        %v2613 = vld [vmem:[%s8 + $0x8] sm:$0xff]
        %v2614 = vld [vmem:[%s8 + $0x10] sm:$0xff]
        %v2615 = vld [vmem:[%s8 + $0x18] sm:$0xff]
        %v2616 = vld [vmem:[%s8 + $0x20] sm:$0xff]
        %v2617 = vld [vmem:[%s8 + $0x28] sm:$0xff]
        %v2618 = vld [vmem:[%s8 + $0x30] sm:$0xff]
        %v2619 = vld [vmem:[%s8 + $0x38] sm:$0xff]
        %2621 = vset.pattern.permute.xlu0 0
        %2622 = vperm.xlu0 %2621, %v2612
        %v2623 = vpop.permute.xlu0 %2622
        %2626 = vset.pattern.permute.xlu0 0
        %2627 = vperm.xlu0 %2626, %v2613
        %v2628 = vpop.permute.xlu0 %2627
        %2631 = vset.pattern.permute.xlu0 0
        %2632 = vperm.xlu0 %2631, %v2614
        %v2633 = vpop.permute.xlu0 %2632
        %2636 = vset.pattern.permute.xlu0 0
        %2637 = vperm.xlu0 %2636, %v2615
        %v2638 = vpop.permute.xlu0 %2637
        %2641 = vset.pattern.permute.xlu0 0
        %2642 = vperm.xlu0 %2641, %v2616
        %v2643 = vpop.permute.xlu0 %2642
        %2646 = vset.pattern.permute.xlu0 0
        %2647 = vperm.xlu0 %2646, %v2617
        %v2648 = vpop.permute.xlu0 %2647
        %2651 = vset.pattern.permute.xlu0 0
        %2652 = vperm.xlu0 %2651, %v2618
        %v2653 = vpop.permute.xlu0 %2652
        %2656 = vset.pattern.permute.xlu0 0
        %2657 = vperm.xlu0 %2656, %v2619
        %v2658 = vpop.permute.xlu0 %2657
        %v2660 = vmul.f32 %v2623, %v2596
        %v2661 = vmul.f32 %v2623, %v2597
        %v2662 = vmul.f32 %v2628, %v2598
        %v2663 = vmul.f32 %v2628, %v2599
        %v2664 = vmul.f32 %v2633, %v2600
        %v2665 = vmul.f32 %v2633, %v2601
        %v2666 = vmul.f32 %v2638, %v2602
        %v2667 = vmul.f32 %v2638, %v2603
        %v2668 = vmul.f32 %v2643, %v2604
        %v2669 = vmul.f32 %v2643, %v2605
        %v2670 = vmul.f32 %v2648, %v2606
        %v2671 = vmul.f32 %v2648, %v2607
        %v2672 = vmul.f32 %v2653, %v2608
        %v2673 = vmul.f32 %v2653, %v2609
        %v2674 = vmul.f32 %v2658, %v2610
        %v2675 = vmul.f32 %v2658, %v2611
        %v2676 = vadd.f32 %v2660, %v2662
        %v2677 = vadd.f32 %v2676, %v2664
        %v2678 = vadd.f32 %v2677, %v2666
        %v2679 = vadd.f32 %v2678, %v2668
        %v2680 = vadd.f32 %v2679, %v2670
        %v2681 = vadd.f32 %v2680, %v2672
        %v2682 = vadd.f32 %v2681, %v2674
        %v2683 = vrot.slane %v2682, 4
        %v2684 = vadd.f32 %v2682, %v2683
        %v2685 = vrot.slane %v2684, 2
        %v2686 = vadd.f32 %v2684, %v2685
        %v2687 = vrot.slane %v2686, 1
        %v2688 = vadd.f32 %v2686, %v2687
        %v2689 = vadd.f32 %v2661, %v2663
        %v2690 = vadd.f32 %v2689, %v2665
        %v2691 = vadd.f32 %v2690, %v2667
        %v2692 = vadd.f32 %v2691, %v2669
        %v2693 = vadd.f32 %v2692, %v2671
        %v2694 = vadd.f32 %v2693, %v2673
        %v2695 = vadd.f32 %v2694, %v2675
        %v2696 = vrot.slane %v2695, 4
        %v2697 = vadd.f32 %v2695, %v2696
        %v2698 = vrot.slane %v2697, 2
        %v2699 = vadd.f32 %v2697, %v2698
        %v2700 = vrot.slane %v2699, 1
        %v2701 = vadd.f32 %v2699, %v2700
        %v2702 = vld [vmem:[#allocation2] sm:$0x1]
        %2704 = vset.pattern.permute.xlu0 0
        %2705 = vperm.xlu0 %2704, %v2702
        %v2706 = vpop.permute.xlu0 %2705
        %v2708 = vlaneseq
        %v2709 = vshrl.u32 %v2708, 7
        %v2710 = vsub.s32 0, %v2709
        %v2711 = vrot.slane %v2706, %v2710
        %v2712 = vadd.f32 %v2688, %v2711
        %v2713 = vadd.f32 %v2701, %v2711
        %v2716 = vcombine.low %v2712, %v2713
        %v2718 = vunpack.c.l.s4 1966171168
        %v2719 = vunpack.c.0.s8 %v2718
        %v2720 = vlaneseq
        %v2721 = vshrl.u32 %v2720, 7
        %v2722 = vsub.s32 %v2719, %v2721
        %v2723 = vrot.slane %v2716, %v2722
        %v2725 = vunpack.c.l.s4 1966171168
        %v2726 = vunpack.c.0.s8 %v2725
        %v2727 = vlaneseq
        %v2728 = vshrl.u32 %v2727, 7
        %v2729 = vsub.s32 %v2726, %v2728
        %v2730 = vrot.slane %v2723, %v2729
        %v2732 = vlaneseq
        %vm2733 = vcmp.ge.s32.totalorder %v2732, 0
        %vm2734 = vcmp.lt.s32.totalorder %v2732, 256
        %vm2735 = vmand %vm2733, %vm2734
        %2736 = vst.msk [vmem:[%s355] sm:$0x3] %vm2735, %v2730
        %s2737 = sand.u32 %s249, 1
        %s2738 = scalar_lea.sflag [#allocation4], %s2737
        %s2739 = sand.u32 %s249, 1
        %s2740 = smul.addr %s2739, 2
        %s2741 = scalar_lea.vmem [#allocation3], %s2740
        // Predicated region
        $region61: #{tpu_custom_call.1} parent=59 // pred_check
          %p2742 = pneg %p259
        $region62: #{tpu_custom_call.1} parent=59 // pred_check_branch
          %2744 = sbr.rel (%p2742) target = $region64
        $region63: #{tpu_custom_call.1} parent=59 // pred_region
          %s2745 = smul.u32 2, %s26
          %s2747 = ssub.s32 32, 32
          %2748 = vsyncadd %s2738, %s2747
          %s2749 = smul.addr %s2745, 16
          %s2750 = scalar_lea.hbm %s10, %s2749
          %s2752 = sshll.u32 %s2741, 4
          %s2753 = int_to_ptr.vmem [resolvable:$true] %s2752
          %2755 = dma.vmem_to_hbm [thread:$0]  %s2753, 32, %s2750, %s2738
        $region64: #{tpu_custom_call.1} parent=59 // pred_fallthru
          _
      $region60: #{tpu_custom_call.1} parent=5 // pred_fallthru
        _
      %p2756 = scmp.le.s32.totalorder 2, %s21
      // Predicated region
      $region65: #{tpu_custom_call.1} parent=5 // pred_check
        %p2757 = pneg %p2756
      $region66: #{tpu_custom_call.1} parent=5 // pred_check_branch
        %2759 = sbr.rel (%p2757) target = $region68
      $region67: #{tpu_custom_call.1} parent=5 // pred_region
        %s2760 = ssub.s32 %s21, 2
        // Predicated region
        $region69: #{tpu_custom_call.1} parent=67 // pred_check
          %p2761 = pneg %p265
        $region70: #{tpu_custom_call.1} parent=67 // pred_check_branch
          %2763 = sbr.rel (%p2761) target = $region72
        $region71: #{tpu_custom_call.1} parent=67 // pred_region
          %s2764 = sand.u32 %s250, 1
          %s2765 = scalar_lea.sflag [#allocation4], %s2764
          %s2766 = sand.u32 %s250, 1
          %s2767 = smul.addr %s2766, 2
          %s2768 = scalar_lea.vmem [#allocation3], %s2767
          %2769 = dma.done %s2765, 32
        $region72: #{tpu_custom_call.1} parent=67 // pred_fallthru
          _
      $region68: #{tpu_custom_call.1} parent=5 // pred_fallthru
        _
    $region6: #{tpu_custom_call.1} parent=1 // loop_footer
      %s25 = sadd.s32 1, %s21
    $region7: #{tpu_custom_call.1} parent=1 // loop_footer_branch
      %20 = sbr.rel target = $region3
    $region8: #{tpu_custom_call.1} parent=1 // loop_exit
      _
    %2770 = vsyncpa [#allocation4], 1
    %s2771 = scalar_lea.sflag [#allocation4], 1
    %2772 = vsyncpa %s2771, 1

</llo_original>
